<compile_context>
chip_gen: v6e
topology: v6e:2x2x1
jax: 0.10.0
libtpu: 0.0.40
codegen_flags: <defaults>
</compile_context>

<pallas_src>
import functools

import numpy as np
import jax
import jax.numpy as jnp
from jax.experimental import pallas as pl
from jax.experimental.pallas import tpu as pltpu


# ------------------------------------------------------------------ kernel ---
def _egcl_mask_kernel(edges_ref, growT_ref, coord_ref, h_ref,
                      hw_ref, wrad_ref, be1_ref, we2_ref, be2_ref,
                      wc1_ref, bc1_ref, wc2_ref, p_ref, r_ref,
                      wn1_ref, bn1_ref, wn2_ref, bn2_ref,
                      wadj_ref, badj_ref,
                      h_out_ref, coord_out_ref,
                      acc_ref,
                      *, N, H, coords_weight, cdt):
    """One edge-tile step of E_GCL_mask.

    Grid: (num_edge_tiles,), marked "arbitrary" (segment sums accumulate in acc_ref);
    node/coord outputs are written once on the last tile.
    """
    f32 = jnp.float32
    # bf16 (or cdt) MXU operands, fp32 accumulation.
    dot = lambda a, b: jnp.dot(a.astype(cdt), b.astype(cdt), preferred_element_type=f32)
    relu = lambda x: jnp.maximum(x, 0.0)

    e = pl.program_id(0)

    @pl.when(e == 0)
    def _init():
        acc_ref[...] = jnp.zeros_like(acc_ref)

    edges = edges_ref[...]                       # (tE, 3N+1) packed edge-tile data
    g_pair = edges[:, :2 * N]                    # [G_row | G_col]
    g_diff = edges[:, 2 * N:3 * N]               # G_row - G_col  (exact 0/+-1)
    emask = edges[:, 3 * N:3 * N + 1].astype(f32)  # (tE, 1) edge mask (0/1)

    coord = coord_ref[...]                       # (N, D*m_in)   resident across grid

    # coord_diff gather: (G_row - G_col) @ coord, one matmul
    diff = dot(g_diff, coord)                    # (tE, D*m_in)  fp32

    # ---- edge model: layer-1 = gathered precomputed h@W + radial part -------
    # hw_ref = [h@W_src ; h@W_tgt] (2N, H); radial@W_rad == (diff*diff)@tile(W_rad,(D,1))
    e1 = relu(dot(g_pair, hw_ref[...]) + dot(diff * diff, wrad_ref[...]) + be1_ref[...])
    edge_feat = relu(dot(e1, we2_ref[...]) + be2_ref[...]) * emask       # (tE, H) masked

    # ---- coord model: D-tiling folded into wc2_tiled; edge_mask folded once --
    c1 = relu(dot(edge_feat, wc1_ref[...]) + bc1_ref[...])
    m_big = dot(c1, wc2_ref[...]) * emask                                # (tE, prod_pad)

    # per-edge contraction trans[:,d,o] = sum_m diff[:,d,m]*M[:,m,o], lane-dense:
    # expand diff over o with exact 0/1 matrix P (one MXU push); the sum over m is a
    # single exact 0/1 reduction matmul R applied once after the segment sum.
    diff_rep = dot(diff, p_ref[...])                                     # (tE, prod_pad)
    prod = diff_rep * m_big                                              # already masked

    # ---- merged segment sums: ONE scatter matmul per tile (pre-transposed G) -
    seg_in = jnp.concatenate([edge_feat, prod], axis=1)                  # (tE, seg_pad)
    acc_ref[...] += dot(growT_ref[...], seg_in)                          # (N, seg_pad)

    # ---- finalize: node model + coord update, single lane-dense stores -------
    @pl.when(e == pl.num_programs(0) - 1)
    def _finalize():
        h = h_ref[...]
        agg = acc_ref[...]
        agg_h = agg[:, :H]                                   # segsum(edge_feat, row)
        trans_agg = dot(agg[:, H:], r_ref[...])              # (N, D*m_out), sum over m

        # coord_adjust (block-diagonal weight) + aggregated translation, one store
        coord_out_ref[...] = (dot(coord, wadj_ref[...]) + badj_ref[...]
                              + trans_agg * coords_weight)

        # node model (recurrent=True)
        node_in = jnp.concatenate([h, agg_h], axis=1)        # (N, F + H)
        n1 = relu(dot(node_in, wn1_ref[...]) + bn1_ref[...])
        h_out_ref[...] = h + dot(n1, wn2_ref[...]) + bn2_ref[...]


# ----------------------------------------------------------------- wrapper ---
def e_gcl_mask_forward(h, coord, edge_index, node_mask, edge_mask, params,
                       *, coords_weight=1.0, edge_tile=128,
                       compute_dtype=jnp.bfloat16):
    """Forward pass of E_GCL_mask. node_mask is accepted for signature parity but
    (as in the PyTorch module) is unused in the forward computation."""
    del node_mask
    N, F = h.shape
    _, D, m_in = coord.shape
    H = params["b_e1"].shape[1]
    m_out = params["w_adj"].shape[1]
    row, col = edge_index
    E = int(row.shape[0])
    cdt = compute_dtype

    # ---- edge padding / tiling: one big tile when the graph fits ------------
    if E <= edge_tile:
        E_pad = max(16, -(-E // 16) * 16)   # single tile, sublane-aligned
        edge_tile = E_pad
    else:
        assert edge_tile % 128 == 0, "edge_tile must be a multiple of 128 when tiling"
        E_pad = -(-E // edge_tile) * edge_tile
    num_tiles = E_pad // edge_tile
    pad = E_pad - E
    if pad:
        # padded edges have mask 0 and scatter an all-zero payload into node 0
        # (masking happens BEFORE the segment sum), so they are exact no-ops.
        row = jnp.concatenate([row, jnp.zeros((pad,), row.dtype)])
        col = jnp.concatenate([col, jnp.zeros((pad,), col.dtype)])
        edge_mask = jnp.concatenate([edge_mask, jnp.zeros((pad, 1), edge_mask.dtype)])

    # ---- one-hot gather/scatter matrices, packed into ONE edge-tiled array ---
    # TODO(synk): for N >~ 128 replace O(E*N) one-hot matmuls with scalar-prefetched
    # row/col indices + DMA gathers / index-based scatter.
    G_row = jax.nn.one_hot(row, N, dtype=jnp.float32)                 # (E_pad, N)
    G_col = jax.nn.one_hot(col, N, dtype=jnp.float32)                 # (E_pad, N)
    packed = jnp.concatenate([G_row, G_col, G_row - G_col,
                              edge_mask.astype(jnp.float32)], axis=1).astype(cdt)
    growT = G_row.T.astype(cdt)             # pre-transposed scatter matrix (N, E_pad)

    coord_flat = coord.reshape(N, D * m_in).astype(cdt)

    # ---- edge-MLP layer 1: hoist edge-independent h@W products, fold radial --
    w_e1 = params["w_e1"]                                            # (2F + m_in, H)
    hw_pack = jnp.concatenate([jnp.dot(h, w_e1[:F]),
                               jnp.dot(h, w_e1[F:2 * F])], axis=0).astype(cdt)  # (2N, H)
    w_rad = jnp.tile(w_e1[2 * F:], (D, 1)).astype(cdt)               # (D*m_in, H)

    # ---- coord path: fold xD tiling into w_c2; keep accumulator lane width %128
    prod_w = D * m_in * m_out
    seg_pad = -(-(H + prod_w) // 128) * 128         # lane-dense accumulator invariant
    prod_pad = seg_pad - H
    wc2_tiled = jnp.tile(params["w_c2"], (1, D))                     # (H, D*m_in*m_out)
    wc2_tiled = jnp.pad(wc2_tiled, ((0, 0), (0, prod_pad - prod_w))).astype(cdt)

    # exact 0/1 expansion / reduction matrices (zero columns/rows in the pad lanes):
    #   P[(d,m), (d,m,o)] = 1   (expand diff over the m_out lane axis)
    #   R[(d,m,o), (d,o)] = 1   (sum over m, applied once post-segment-sum)
    P = np.zeros((D * m_in, prod_pad), np.float32)
    R = np.zeros((prod_pad, D * m_out), np.float32)
    for d in range(D):
        for m in range(m_in):
            for o in range(m_out):
                c = (d * m_in + m) * m_out + o
                P[d * m_in + m, c] = 1.0
                R[c, d * m_out + o] = 1.0
    P = jnp.asarray(P).astype(cdt)
    R = jnp.asarray(R).astype(cdt)

    # block-diagonal coord_adjust weight acting on the flattened (d, m) layout
    w_adj_bd = jax.scipy.linalg.block_diag(*([params["w_adj"]] * D)).astype(cdt)
    b_adj_big = jnp.tile(params["b_adj"], (1, D))                    # (1, D*m_out)

    kern = functools.partial(_egcl_mask_kernel, N=N, H=H,
                             coords_weight=coords_weight, cdt=cdt)

    def full(shape):
        return pl.BlockSpec(shape, lambda e: (0,) * len(shape))

    in_specs = [
        pl.BlockSpec((edge_tile, 3 * N + 1), lambda e: (e, 0)),   # packed edge data
        pl.BlockSpec((N, edge_tile), lambda e: (0, e)),           # G_row^T (scatter)
        full((N, D * m_in)),                                      # coord     (resident)
        full((N, F)),                                             # h         (resident)
        full(hw_pack.shape), full(w_rad.shape), full(params["b_e1"].shape),
        full(params["w_e2"].shape), full(params["b_e2"].shape),
        full(params["w_c1"].shape), full(params["b_c1"].shape),
        full(wc2_tiled.shape), full(P.shape), full(R.shape),
        full(params["w_n1"].shape), full(params["b_n1"].shape),
        full(params["w_n2"].shape), full(params["b_n2"].shape),
        full(w_adj_bd.shape), full(b_adj_big.shape),
    ]

    grid_spec = pltpu.PrefetchScalarGridSpec(
        num_scalar_prefetch=0,
        grid=(num_tiles,),
        in_specs=in_specs,
        out_specs=(pl.BlockSpec((N, F), lambda e: (0, 0)),
                   pl.BlockSpec((N, D * m_out), lambda e: (0, 0))),
        scratch_shapes=[pltpu.VMEM((N, seg_pad), jnp.float32)],
    )

    h_out, coord_out_flat = pl.pallas_call(
        kern,
        out_shape=(jax.ShapeDtypeStruct((N, F), jnp.float32),
                   jax.ShapeDtypeStruct((N, D * m_out), jnp.float32)),
        grid_spec=grid_spec,
        compiler_params=pltpu.CompilerParams(
            dimension_semantics=("arbitrary",),   # edge axis accumulates -> not parallel
            vmem_limit_bytes=32 * 1024 * 1024),   # <= v7x scoped default; fine on v5e/v6e
    )(packed, growT, coord_flat, h.astype(jnp.float32),
      hw_pack, w_rad, params["b_e1"],
      params["w_e2"].astype(cdt), params["b_e2"],
      params["w_c1"].astype(cdt), params["b_c1"],
      wc2_tiled, P, R,
      params["w_n1"].astype(cdt), params["b_n1"],
      params["w_n2"].astype(cdt), params["b_n2"],
      w_adj_bd, b_adj_big)

    return h_out, coord_out_flat.reshape(N, D, m_out)


# ------------------------------------------------------------------ params ---
def init_params(key, F, H, m_in, m_out, out_nf):
    def linear(k, fan_in, fan_out):
        kw, kb = jax.random.split(k)
        bound = 1.0 / (fan_in ** 0.5)
        W = jax.random.uniform(kw, (fan_in, fan_out), jnp.float32, -bound, bound)
        b = jax.random.uniform(kb, (1, fan_out), jnp.float32, -bound, bound)
        return W, b

    ks = jax.random.split(key, 7)
    w_e1, b_e1 = linear(ks[0], 2 * F + m_in, H)     # edge_mlp[0]
    w_e2, b_e2 = linear(ks[1], H, H)                # edge_mlp[2]
    w_n1, b_n1 = linear(ks[2], H + F, H)            # node_mlp[0]
    w_n2, b_n2 = linear(ks[3], H, out_nf)           # node_mlp[2]
    w_c1, b_c1 = linear(ks[4], H, H)                # coord_mlp[0]
    a = 0.001 * (6.0 / (H + m_in * m_out)) ** 0.5   # xavier_uniform, gain=0.001
    w_c2 = jax.random.uniform(ks[5], (H, m_in * m_out), jnp.float32, -a, a)  # no bias
    w_adj, b_adj = linear(ks[6], m_in, m_out)       # coord_adjust_mlp (m_in != m_out)
    return dict(w_e1=w_e1, b_e1=b_e1, w_e2=w_e2, b_e2=b_e2,
                w_n1=w_n1, b_n1=b_n1, w_n2=w_n2, b_n2=b_n2,
                w_c1=w_c1, b_c1=b_c1, w_c2=w_c2,
                w_adj=w_adj, b_adj=b_adj)


# --------------------------------------------------------- pure-JAX reference ---
def reference_forward(h, coord, edge_index, edge_mask, params, *, coords_weight=1.0):
    row, col = edge_index
    N, _ = h.shape
    _, D, m_in = coord.shape
    m_out = params["w_adj"].shape[1]
    mm = functools.partial(jnp.dot, precision=jax.lax.Precision.HIGHEST)
    relu = lambda x: jnp.maximum(x, 0.0)

    coord_diff = coord[row] - coord[col]                      # (E, D, m_in)
    radial = jnp.sum(coord_diff ** 2, axis=1)                 # (E, m_in)
    edge_in = jnp.concatenate([h[row], h[col], radial], axis=1)
    e1 = relu(mm(edge_in, params["w_e1"]) + params["b_e1"])
    edge_feat = relu(mm(e1, params["w_e2"]) + params["b_e2"])
    edge_feat = edge_feat * edge_mask

    c1 = relu(mm(edge_feat, params["w_c1"]) + params["b_c1"])
    M = mm(c1, params["w_c2"]).reshape(-1, m_in, m_out)
    trans = jnp.einsum("edm,emo->edo", coord_diff, M,
                       precision=jax.lax.Precision.HIGHEST) * edge_mask[:, :, None]
    agg = jax.ops.segment_sum(trans, row, num_segments=N)
    coord_out = mm(coord, params["w_adj"]) + params["b_adj"] + agg * coords_weight

    agg_h = jax.ops.segment_sum(edge_feat, row, num_segments=N)
    node_in = jnp.concatenate([h, agg_h], axis=1)
    n1 = relu(mm(node_in, params["w_n1"]) + params["b_n1"])
    h_out = h + mm(n1, params["w_n2"]) + params["b_n2"]
    return h_out, coord_out


# -------------------------------------------------------------------- main ---
if __name__ == "__main__":
    N, D, F, H, m_in, m_out = 8, 3, 32, 32, 4, 8   # input_nf=output_nf=hidden_nf=32

    key = jax.random.PRNGKey(0)
    kp, kh, kc, km = jax.random.split(key, 4)
    params = init_params(kp, F, H, m_in, m_out, F)

    h = jax.random.normal(kh, (N, F), jnp.float32)
    coord = jax.random.normal(kc, (N, D, m_in), jnp.float32)

    # fully connected graph without self loops -> E = N*(N-1) = 56 edges
    rows, cols = [], []
    for i in range(N):
        for j in range(N):
            if i != j:
                rows.append(i)
                cols.append(j)
    row = jnp.array(rows, dtype=jnp.int32)
    col = jnp.array(cols, dtype=jnp.int32)
    E = int(row.shape[0])

    edge_mask = (jax.random.uniform(km, (E, 1)) > 0.2).astype(jnp.float32)
    node_mask = jnp.ones((N, 1), jnp.float32)   # unused in forward (matches PyTorch)

    h_out, coord_out = e_gcl_mask_forward(h, coord, (row, col), node_mask,
                                          edge_mask, params, coords_weight=1.0)
    jax.block_until_ready((h_out, coord_out))

    h_ref, c_ref = reference_forward(h, coord, (row, col), edge_mask, params,
                                     coords_weight=1.0)
    assert h_out.shape == (N, F) and coord_out.shape == (N, D, m_out)
    assert jnp.allclose(h_out, h_ref, atol=3e-2, rtol=3e-2)
    assert jnp.allclose(coord_out, c_ref, atol=3e-2, rtol=3e-2)

    print("KERNEL_OK")
</pallas_src>

<mosaic_0001>
module attributes {stable_mosaic.version = 11 : i64} {
  func.func @_egcl_mask_kernel(%arg0: i32, %arg1: memref<64x25xbf16, #tpu.memory_space<vmem>>, %arg2: memref<8x64xbf16, #tpu.memory_space<vmem>>, %arg3: memref<8x12xbf16, #tpu.memory_space<vmem>>, %arg4: memref<8x32xf32, #tpu.memory_space<vmem>>, %arg5: memref<16x32xbf16, #tpu.memory_space<vmem>>, %arg6: memref<12x32xbf16, #tpu.memory_space<vmem>>, %arg7: memref<1x32xf32, #tpu.memory_space<vmem>>, %arg8: memref<32x32xbf16, #tpu.memory_space<vmem>>, %arg9: memref<1x32xf32, #tpu.memory_space<vmem>>, %arg10: memref<32x32xbf16, #tpu.memory_space<vmem>>, %arg11: memref<1x32xf32, #tpu.memory_space<vmem>>, %arg12: memref<32x96xbf16, #tpu.memory_space<vmem>>, %arg13: memref<12x96xbf16, #tpu.memory_space<vmem>>, %arg14: memref<96x24xbf16, #tpu.memory_space<vmem>>, %arg15: memref<64x32xbf16, #tpu.memory_space<vmem>>, %arg16: memref<1x32xf32, #tpu.memory_space<vmem>>, %arg17: memref<32x32xbf16, #tpu.memory_space<vmem>>, %arg18: memref<1x32xf32, #tpu.memory_space<vmem>>, %arg19: memref<12x24xbf16, #tpu.memory_space<vmem>>, %arg20: memref<1x24xf32, #tpu.memory_space<vmem>>, %arg21: memref<8x32xf32, #tpu.memory_space<vmem>>, %arg22: memref<8x24xf32, #tpu.memory_space<vmem>>, %arg23: memref<8x128xf32, #tpu.memory_space<vmem>>) attributes {dimension_semantics = [#tpu.dimension_semantics<arbitrary>], iteration_bounds = array<i64: 1>, scalar_prefetch = 0 : i64, scratch_operands = 1 : i64, tpu.core_type = #tpu.core_type<tc>, window_params = [{transform_indices = @transform_0, window_bounds = array<i64: 64, 25>}, {transform_indices = @transform_1, window_bounds = array<i64: 8, 64>}, {pipeline_mode = #tpu.pipeline_mode<synchronous>, transform_indices = @transform_2, window_bounds = array<i64: 8, 12>}, {pipeline_mode = #tpu.pipeline_mode<synchronous>, transform_indices = @transform_3, window_bounds = array<i64: 8, 32>}, {pipeline_mode = #tpu.pipeline_mode<synchronous>, transform_indices = @transform_4, window_bounds = array<i64: 16, 32>}, {pipeline_mode = #tpu.pipeline_mode<synchronous>, transform_indices = @transform_5, window_bounds = array<i64: 12, 32>}, {pipeline_mode = #tpu.pipeline_mode<synchronous>, transform_indices = @transform_6, window_bounds = array<i64: 1, 32>}, {pipeline_mode = #tpu.pipeline_mode<synchronous>, transform_indices = @transform_7, window_bounds = array<i64: 32, 32>}, {pipeline_mode = #tpu.pipeline_mode<synchronous>, transform_indices = @transform_8, window_bounds = array<i64: 1, 32>}, {pipeline_mode = #tpu.pipeline_mode<synchronous>, transform_indices = @transform_9, window_bounds = array<i64: 32, 32>}, {pipeline_mode = #tpu.pipeline_mode<synchronous>, transform_indices = @transform_10, window_bounds = array<i64: 1, 32>}, {pipeline_mode = #tpu.pipeline_mode<synchronous>, transform_indices = @transform_11, window_bounds = array<i64: 32, 96>}, {pipeline_mode = #tpu.pipeline_mode<synchronous>, transform_indices = @transform_12, window_bounds = array<i64: 12, 96>}, {pipeline_mode = #tpu.pipeline_mode<synchronous>, transform_indices = @transform_13, window_bounds = array<i64: 96, 24>}, {pipeline_mode = #tpu.pipeline_mode<synchronous>, transform_indices = @transform_14, window_bounds = array<i64: 64, 32>}, {pipeline_mode = #tpu.pipeline_mode<synchronous>, transform_indices = @transform_15, window_bounds = array<i64: 1, 32>}, {pipeline_mode = #tpu.pipeline_mode<synchronous>, transform_indices = @transform_16, window_bounds = array<i64: 32, 32>}, {pipeline_mode = #tpu.pipeline_mode<synchronous>, transform_indices = @transform_17, window_bounds = array<i64: 1, 32>}, {pipeline_mode = #tpu.pipeline_mode<synchronous>, transform_indices = @transform_18, window_bounds = array<i64: 12, 24>}, {pipeline_mode = #tpu.pipeline_mode<synchronous>, transform_indices = @transform_19, window_bounds = array<i64: 1, 24>}, {pipeline_mode = #tpu.pipeline_mode<synchronous>, transform_indices = @transform_20, window_bounds = array<i64: 8, 32>}, {pipeline_mode = #tpu.pipeline_mode<synchronous>, transform_indices = @transform_21, window_bounds = array<i64: 8, 24>}]} {
    %c0_i32 = arith.constant 0 : i32
    %0 = arith.cmpi eq, %arg0, %c0_i32 : i32
    %1 = arith.extui %0 : i1 to i32
    %c0_i32_0 = arith.constant 0 : i32
    %2 = arith.cmpi ne, %1, %c0_i32_0 : i32
    scf.if %2 {
      %cst_40 = arith.constant 0.000000e+00 : f32
      %59 = vector.broadcast %cst_40 : f32 to vector<8x128xf32>
      %c0_41 = arith.constant 0 : index
      %c0_42 = arith.constant 0 : index
      %60 = vector.load %arg23[%c0_41, %c0_42] : memref<8x128xf32, #tpu.memory_space<vmem>>, vector<8x128xf32>
      tpu.vector_store %arg23[%c0_41, %c0_42], %59 {strides = array<i32>} : memref<8x128xf32, #tpu.memory_space<vmem>>, vector<8x128xf32>,
    } else {
    }
    %c0 = arith.constant 0 : index
    %c0_1 = arith.constant 0 : index
    %3 = vector.load %arg1[%c0, %c0_1] : memref<64x25xbf16, #tpu.memory_space<vmem>>, vector<64x25xbf16>
    %4 = vector.extract_strided_slice %3 {offsets = [0, 0], sizes = [64, 16], strides = [1, 1]} : vector<64x25xbf16> to vector<64x16xbf16>
    %5 = vector.extract_strided_slice %3 {offsets = [0, 16], sizes = [64, 8], strides = [1, 1]} : vector<64x25xbf16> to vector<64x8xbf16>
    %6 = vector.extract_strided_slice %3 {offsets = [0, 24], sizes = [64, 1], strides = [1, 1]} : vector<64x25xbf16> to vector<64x1xbf16>
    %7 = arith.extf %6 : vector<64x1xbf16> to vector<64x1xf32>
    %c0_2 = arith.constant 0 : index
    %c0_3 = arith.constant 0 : index
    %8 = vector.load %arg3[%c0_2, %c0_3] : memref<8x12xbf16, #tpu.memory_space<vmem>>, vector<8x12xbf16>
    %cst = arith.constant dense<0.000000e+00> : vector<64x12xf32>
    %9 = tpu.matmul %5, %8, %cst {dimension_numbers = #tpu.dot_dimension_numbers<[1], [0], [0], [1], [0, 0, 1, 1], [], []>} : vector<64x8xbf16>, vector<8x12xbf16>, vector<64x12xf32> -> vector<64x12xf32>
    %c0_4 = arith.constant 0 : index
    %c0_5 = arith.constant 0 : index
    %10 = vector.load %arg5[%c0_4, %c0_5] : memref<16x32xbf16, #tpu.memory_space<vmem>>, vector<16x32xbf16>
    %cst_6 = arith.constant dense<0.000000e+00> : vector<64x32xf32>
    %11 = tpu.matmul %4, %10, %cst_6 {dimension_numbers = #tpu.dot_dimension_numbers<[1], [0], [0], [1], [0, 0, 1, 1], [], []>} : vector<64x16xbf16>, vector<16x32xbf16>, vector<64x32xf32> -> vector<64x32xf32>
    %12 = arith.mulf %9, %9 : vector<64x12xf32>
    %c0_7 = arith.constant 0 : index
    %c0_8 = arith.constant 0 : index
    %13 = vector.load %arg6[%c0_7, %c0_8] : memref<12x32xbf16, #tpu.memory_space<vmem>>, vector<12x32xbf16>
    %14 = arith.truncf %12 : vector<64x12xf32> to vector<64x12xbf16>
    %cst_9 = arith.constant dense<0.000000e+00> : vector<64x32xf32>
    %15 = tpu.matmul %14, %13, %cst_9 {dimension_numbers = #tpu.dot_dimension_numbers<[1], [0], [0], [1], [0, 0, 1, 1], [], []>} : vector<64x12xbf16>, vector<12x32xbf16>, vector<64x32xf32> -> vector<64x32xf32>
    %16 = arith.addf %11, %15 : vector<64x32xf32>
    %c0_10 = arith.constant 0 : index
    %c0_11 = arith.constant 0 : index
    %17 = vector.load %arg7[%c0_10, %c0_11] : memref<1x32xf32, #tpu.memory_space<vmem>>, vector<1x32xf32>
    %18 = vector.broadcast %17 : vector<1x32xf32> to vector<64x32xf32>
    %19 = arith.addf %16, %18 : vector<64x32xf32>
    %cst_12 = arith.constant 0.000000e+00 : f32
    %20 = vector.broadcast %cst_12 : f32 to vector<64x32xf32>
    %21 = arith.maximumf %19, %20 : vector<64x32xf32>
    %c0_13 = arith.constant 0 : index
    %c0_14 = arith.constant 0 : index
    %22 = vector.load %arg8[%c0_13, %c0_14] : memref<32x32xbf16, #tpu.memory_space<vmem>>, vector<32x32xbf16>
    %23 = arith.truncf %21 : vector<64x32xf32> to vector<64x32xbf16>
    %cst_15 = arith.constant dense<0.000000e+00> : vector<64x32xf32>
    %24 = tpu.matmul %23, %22, %cst_15 {dimension_numbers = #tpu.dot_dimension_numbers<[1], [0], [0], [1], [0, 0, 1, 1], [], []>} : vector<64x32xbf16>, vector<32x32xbf16>, vector<64x32xf32> -> vector<64x32xf32>
    %c0_16 = arith.constant 0 : index
    %c0_17 = arith.constant 0 : index
    %25 = vector.load %arg9[%c0_16, %c0_17] : memref<1x32xf32, #tpu.memory_space<vmem>>, vector<1x32xf32>
    %26 = vector.broadcast %25 : vector<1x32xf32> to vector<64x32xf32>
    %27 = arith.addf %24, %26 : vector<64x32xf32>
    %cst_18 = arith.constant 0.000000e+00 : f32
    %28 = vector.broadcast %cst_18 : f32 to vector<64x32xf32>
    %29 = arith.maximumf %27, %28 : vector<64x32xf32>
    %30 = vector.broadcast %7 : vector<64x1xf32> to vector<64x32xf32>
    %31 = arith.mulf %29, %30 : vector<64x32xf32>
    %c0_19 = arith.constant 0 : index
    %c0_20 = arith.constant 0 : index
    %32 = vector.load %arg10[%c0_19, %c0_20] : memref<32x32xbf16, #tpu.memory_space<vmem>>, vector<32x32xbf16>
    %33 = arith.truncf %31 : vector<64x32xf32> to vector<64x32xbf16>
    %cst_21 = arith.constant dense<0.000000e+00> : vector<64x32xf32>
    %34 = tpu.matmul %33, %32, %cst_21 {dimension_numbers = #tpu.dot_dimension_numbers<[1], [0], [0], [1], [0, 0, 1, 1], [], []>} : vector<64x32xbf16>, vector<32x32xbf16>, vector<64x32xf32> -> vector<64x32xf32>
    %c0_22 = arith.constant 0 : index
    %c0_23 = arith.constant 0 : index
    %35 = vector.load %arg11[%c0_22, %c0_23] : memref<1x32xf32, #tpu.memory_space<vmem>>, vector<1x32xf32>
    %36 = vector.broadcast %35 : vector<1x32xf32> to vector<64x32xf32>
    %37 = arith.addf %34, %36 : vector<64x32xf32>
    %cst_24 = arith.constant 0.000000e+00 : f32
    %38 = vector.broadcast %cst_24 : f32 to vector<64x32xf32>
    %39 = arith.maximumf %37, %38 : vector<64x32xf32>
    %c0_25 = arith.constant 0 : index
    %c0_26 = arith.constant 0 : index
    %40 = vector.load %arg12[%c0_25, %c0_26] : memref<32x96xbf16, #tpu.memory_space<vmem>>, vector<32x96xbf16>
    %41 = arith.truncf %39 : vector<64x32xf32> to vector<64x32xbf16>
    %cst_27 = arith.constant dense<0.000000e+00> : vector<64x96xf32>
    %42 = tpu.matmul %41, %40, %cst_27 {dimension_numbers = #tpu.dot_dimension_numbers<[1], [0], [0], [1], [0, 0, 1, 1], [], []>} : vector<64x32xbf16>, vector<32x96xbf16>, vector<64x96xf32> -> vector<64x96xf32>
    %43 = vector.broadcast %7 : vector<64x1xf32> to vector<64x96xf32>
    %44 = arith.mulf %42, %43 : vector<64x96xf32>
    %c0_28 = arith.constant 0 : index
    %c0_29 = arith.constant 0 : index
    %45 = vector.load %arg13[%c0_28, %c0_29] : memref<12x96xbf16, #tpu.memory_space<vmem>>, vector<12x96xbf16>
    %46 = arith.truncf %9 : vector<64x12xf32> to vector<64x12xbf16>
    %cst_30 = arith.constant dense<0.000000e+00> : vector<64x96xf32>
    %47 = tpu.matmul %46, %45, %cst_30 {dimension_numbers = #tpu.dot_dimension_numbers<[1], [0], [0], [1], [0, 0, 1, 1], [], []>} : vector<64x12xbf16>, vector<12x96xbf16>, vector<64x96xf32> -> vector<64x96xf32>
    %48 = arith.mulf %47, %44 : vector<64x96xf32>
    %49 = tpu.concatenate %31, %48 in 1 : vector<64x32xf32>, vector<64x96xf32> -> vector<64x128xf32>
    %c0_31 = arith.constant 0 : index
    %c0_32 = arith.constant 0 : index
    %50 = vector.load %arg23[%c0_31, %c0_32] : memref<8x128xf32, #tpu.memory_space<vmem>>, vector<8x128xf32>
    %c0_33 = arith.constant 0 : index
    %c0_34 = arith.constant 0 : index
    %51 = vector.load %arg2[%c0_33, %c0_34] : memref<8x64xbf16, #tpu.memory_space<vmem>>, vector<8x64xbf16>
    %52 = arith.truncf %49 : vector<64x128xf32> to vector<64x128xbf16>
    %cst_35 = arith.constant dense<0.000000e+00> : vector<8x128xf32>
    %53 = tpu.matmul %51, %52, %cst_35 {dimension_numbers = #tpu.dot_dimension_numbers<[1], [0], [0], [1], [0, 0, 1, 1], [], []>} : vector<8x64xbf16>, vector<64x128xbf16>, vector<8x128xf32> -> vector<8x128xf32>
    %54 = arith.addf %50, %53 : vector<8x128xf32>
    %c0_36 = arith.constant 0 : index
    %c0_37 = arith.constant 0 : index
    %55 = vector.load %arg23[%c0_36, %c0_37] : memref<8x128xf32, #tpu.memory_space<vmem>>, vector<8x128xf32>
    tpu.vector_store %arg23[%c0_36, %c0_37], %54 {strides = array<i32>} : memref<8x128xf32, #tpu.memory_space<vmem>>, vector<8x128xf32>,
    %c0_i32_38 = arith.constant 0 : i32
    %56 = arith.cmpi eq, %arg0, %c0_i32_38 : i32
    %57 = arith.extui %56 : i1 to i32
    %c0_i32_39 = arith.constant 0 : i32
    %58 = arith.cmpi ne, %57, %c0_i32_39 : i32
    scf.if %58 {
      %c0_40 = arith.constant 0 : index
      %c0_41 = arith.constant 0 : index
      %59 = vector.load %arg4[%c0_40, %c0_41] : memref<8x32xf32, #tpu.memory_space<vmem>>, vector<8x32xf32>
      %c0_42 = arith.constant 0 : index
      %c0_43 = arith.constant 0 : index
      %60 = vector.load %arg23[%c0_42, %c0_43] : memref<8x128xf32, #tpu.memory_space<vmem>>, vector<8x128xf32>
      %61 = vector.extract_strided_slice %60 {offsets = [0, 0], sizes = [8, 32], strides = [1, 1]} : vector<8x128xf32> to vector<8x32xf32>
      %62 = vector.extract_strided_slice %60 {offsets = [0, 32], sizes = [8, 96], strides = [1, 1]} : vector<8x128xf32> to vector<8x96xf32>
      %c0_44 = arith.constant 0 : index
      %c0_45 = arith.constant 0 : index
      %63 = vector.load %arg14[%c0_44, %c0_45] : memref<96x24xbf16, #tpu.memory_space<vmem>>, vector<96x24xbf16>
      %64 = arith.truncf %62 : vector<8x96xf32> to vector<8x96xbf16>
      %cst_46 = arith.constant dense<0.000000e+00> : vector<8x24xf32>
      %65 = tpu.matmul %64, %63, %cst_46 {dimension_numbers = #tpu.dot_dimension_numbers<[1], [0], [0], [1], [0, 0, 1, 1], [], []>} : vector<8x96xbf16>, vector<96x24xbf16>, vector<8x24xf32> -> vector<8x24xf32>
      %c0_47 = arith.constant 0 : index
      %c0_48 = arith.constant 0 : index
      %66 = vector.load %arg19[%c0_47, %c0_48] : memref<12x24xbf16, #tpu.memory_space<vmem>>, vector<12x24xbf16>
      %cst_49 = arith.constant dense<0.000000e+00> : vector<8x24xf32>
      %67 = tpu.matmul %8, %66, %cst_49 {dimension_numbers = #tpu.dot_dimension_numbers<[1], [0], [0], [1], [0, 0, 1, 1], [], []>} : vector<8x12xbf16>, vector<12x24xbf16>, vector<8x24xf32> -> vector<8x24xf32>
      %c0_50 = arith.constant 0 : index
      %c0_51 = arith.constant 0 : index
      %68 = vector.load %arg20[%c0_50, %c0_51] : memref<1x24xf32, #tpu.memory_space<vmem>>, vector<1x24xf32>
      %69 = vector.broadcast %68 : vector<1x24xf32> to vector<8x24xf32>
      %70 = arith.addf %67, %69 : vector<8x24xf32>
      %cst_52 = arith.constant 1.000000e+00 : f32
      %71 = vector.broadcast %cst_52 : f32 to vector<8x24xf32>
      %72 = arith.mulf %65, %71 : vector<8x24xf32>
      %73 = arith.addf %70, %72 : vector<8x24xf32>
      %c0_53 = arith.constant 0 : index
      %c0_54 = arith.constant 0 : index
      %74 = vector.load %arg22[%c0_53, %c0_54] : memref<8x24xf32, #tpu.memory_space<vmem>>, vector<8x24xf32>
      tpu.vector_store %arg22[%c0_53, %c0_54], %73 {strides = array<i32>} : memref<8x24xf32, #tpu.memory_space<vmem>>, vector<8x24xf32>,
      %75 = tpu.concatenate %59, %61 in 1 : vector<8x32xf32>, vector<8x32xf32> -> vector<8x64xf32>
      %c0_55 = arith.constant 0 : index
      %c0_56 = arith.constant 0 : index
      %76 = vector.load %arg15[%c0_55, %c0_56] : memref<64x32xbf16, #tpu.memory_space<vmem>>, vector<64x32xbf16>
      %77 = arith.truncf %75 : vector<8x64xf32> to vector<8x64xbf16>
      %cst_57 = arith.constant dense<0.000000e+00> : vector<8x32xf32>
      %78 = tpu.matmul %77, %76, %cst_57 {dimension_numbers = #tpu.dot_dimension_numbers<[1], [0], [0], [1], [0, 0, 1, 1], [], []>} : vector<8x64xbf16>, vector<64x32xbf16>, vector<8x32xf32> -> vector<8x32xf32>
      %c0_58 = arith.constant 0 : index
      %c0_59 = arith.constant 0 : index
      %79 = vector.load %arg16[%c0_58, %c0_59] : memref<1x32xf32, #tpu.memory_space<vmem>>, vector<1x32xf32>
      %80 = vector.broadcast %79 : vector<1x32xf32> to vector<8x32xf32>
      %81 = arith.addf %78, %80 : vector<8x32xf32>
      %cst_60 = arith.constant 0.000000e+00 : f32
      %82 = vector.broadcast %cst_60 : f32 to vector<8x32xf32>
      %83 = arith.maximumf %81, %82 : vector<8x32xf32>
      %c0_61 = arith.constant 0 : index
      %c0_62 = arith.constant 0 : index
      %84 = vector.load %arg17[%c0_61, %c0_62] : memref<32x32xbf16, #tpu.memory_space<vmem>>, vector<32x32xbf16>
      %85 = arith.truncf %83 : vector<8x32xf32> to vector<8x32xbf16>
      %cst_63 = arith.constant dense<0.000000e+00> : vector<8x32xf32>
      %86 = tpu.matmul %85, %84, %cst_63 {dimension_numbers = #tpu.dot_dimension_numbers<[1], [0], [0], [1], [0, 0, 1, 1], [], []>} : vector<8x32xbf16>, vector<32x32xbf16>, vector<8x32xf32> -> vector<8x32xf32>
      %87 = arith.addf %59, %86 : vector<8x32xf32>
      %c0_64 = arith.constant 0 : index
      %c0_65 = arith.constant 0 : index
      %88 = vector.load %arg18[%c0_64, %c0_65] : memref<1x32xf32, #tpu.memory_space<vmem>>, vector<1x32xf32>
      %89 = vector.broadcast %88 : vector<1x32xf32> to vector<8x32xf32>
      %90 = arith.addf %87, %89 : vector<8x32xf32>
      %c0_66 = arith.constant 0 : index
      %c0_67 = arith.constant 0 : index
      %91 = vector.load %arg21[%c0_66, %c0_67] : memref<8x32xf32, #tpu.memory_space<vmem>>, vector<8x32xf32>
      tpu.vector_store %arg21[%c0_66, %c0_67], %90 {strides = array<i32>} : memref<8x32xf32, #tpu.memory_space<vmem>>, vector<8x32xf32>,
    } else {
    }
    return
  }
  func.func @transform_0(%arg0: i32) -> (i32, i32) {
    %c0_i32 = arith.constant 0 : i32
    %c0_i32_0 = arith.constant 0 : i32
    return %arg0, %c0_i32 : i32, i32
  }
  func.func @transform_1(%arg0: i32) -> (i32, i32) {
    %c0_i32 = arith.constant 0 : i32
    %c0_i32_0 = arith.constant 0 : i32
    return %c0_i32, %arg0 : i32, i32
  }
  func.func @transform_2(%arg0: i32) -> (i32, i32) {
    %c0_i32 = arith.constant 0 : i32
    %c0_i32_0 = arith.constant 0 : i32
    %c0_i32_1 = arith.constant 0 : i32
    return %c0_i32, %c0_i32_0 : i32, i32
  }
  func.func @transform_3(%arg0: i32) -> (i32, i32) {
    %c0_i32 = arith.constant 0 : i32
    %c0_i32_0 = arith.constant 0 : i32
    %c0_i32_1 = arith.constant 0 : i32
    return %c0_i32, %c0_i32_0 : i32, i32
  }
  func.func @transform_4(%arg0: i32) -> (i32, i32) {
    %c0_i32 = arith.constant 0 : i32
    %c0_i32_0 = arith.constant 0 : i32
    %c0_i32_1 = arith.constant 0 : i32
    return %c0_i32, %c0_i32_0 : i32, i32
  }
  func.func @transform_5(%arg0: i32) -> (i32, i32) {
    %c0_i32 = arith.constant 0 : i32
    %c0_i32_0 = arith.constant 0 : i32
    %c0_i32_1 = arith.constant 0 : i32
    return %c0_i32, %c0_i32_0 : i32, i32
  }
  func.func @transform_6(%arg0: i32) -> (i32, i32) {
    %c0_i32 = arith.constant 0 : i32
    %c0_i32_0 = arith.constant 0 : i32
    %c0_i32_1 = arith.constant 0 : i32
    return %c0_i32, %c0_i32_0 : i32, i32
  }
  func.func @transform_7(%arg0: i32) -> (i32, i32) {
    %c0_i32 = arith.constant 0 : i32
    %c0_i32_0 = arith.constant 0 : i32
    %c0_i32_1 = arith.constant 0 : i32
    return %c0_i32, %c0_i32_0 : i32, i32
  }
  func.func @transform_8(%arg0: i32) -> (i32, i32) {
    %c0_i32 = arith.constant 0 : i32
    %c0_i32_0 = arith.constant 0 : i32
    %c0_i32_1 = arith.constant 0 : i32
    return %c0_i32, %c0_i32_0 : i32, i32
  }
  func.func @transform_9(%arg0: i32) -> (i32, i32) {
    %c0_i32 = arith.constant 0 : i32
    %c0_i32_0 = arith.constant 0 : i32
    %c0_i32_1 = arith.constant 0 : i32
    return %c0_i32, %c0_i32_0 : i32, i32
  }
  func.func @transform_10(%arg0: i32) -> (i32, i32) {
    %c0_i32 = arith.constant 0 : i32
    %c0_i32_0 = arith.constant 0 : i32
    %c0_i32_1 = arith.constant 0 : i32
    return %c0_i32, %c0_i32_0 : i32, i32
  }
  func.func @transform_11(%arg0: i32) -> (i32, i32) {
    %c0_i32 = arith.constant 0 : i32
    %c0_i32_0 = arith.constant 0 : i32
    %c0_i32_1 = arith.constant 0 : i32
    return %c0_i32, %c0_i32_0 : i32, i32
  }
  func.func @transform_12(%arg0: i32) -> (i32, i32) {
    %c0_i32 = arith.constant 0 : i32
    %c0_i32_0 = arith.constant 0 : i32
    %c0_i32_1 = arith.constant 0 : i32
    return %c0_i32, %c0_i32_0 : i32, i32
  }
  func.func @transform_13(%arg0: i32) -> (i32, i32) {
    %c0_i32 = arith.constant 0 : i32
    %c0_i32_0 = arith.constant 0 : i32
    %c0_i32_1 = arith.constant 0 : i32
    return %c0_i32, %c0_i32_0 : i32, i32
  }
  func.func @transform_14(%arg0: i32) -> (i32, i32) {
    %c0_i32 = arith.constant 0 : i32
    %c0_i32_0 = arith.constant 0 : i32
    %c0_i32_1 = arith.constant 0 : i32
    return %c0_i32, %c0_i32_0 : i32, i32
  }
  func.func @transform_15(%arg0: i32) -> (i32, i32) {
    %c0_i32 = arith.constant 0 : i32
    %c0_i32_0 = arith.constant 0 : i32
    %c0_i32_1 = arith.constant 0 : i32
    return %c0_i32, %c0_i32_0 : i32, i32
  }
  func.func @transform_16(%arg0: i32) -> (i32, i32) {
    %c0_i32 = arith.constant 0 : i32
    %c0_i32_0 = arith.constant 0 : i32
    %c0_i32_1 = arith.constant 0 : i32
    return %c0_i32, %c0_i32_0 : i32, i32
  }
  func.func @transform_17(%arg0: i32) -> (i32, i32) {
    %c0_i32 = arith.constant 0 : i32
    %c0_i32_0 = arith.constant 0 : i32
    %c0_i32_1 = arith.constant 0 : i32
    return %c0_i32, %c0_i32_0 : i32, i32
  }
  func.func @transform_18(%arg0: i32) -> (i32, i32) {
    %c0_i32 = arith.constant 0 : i32
    %c0_i32_0 = arith.constant 0 : i32
    %c0_i32_1 = arith.constant 0 : i32
    return %c0_i32, %c0_i32_0 : i32, i32
  }
  func.func @transform_19(%arg0: i32) -> (i32, i32) {
    %c0_i32 = arith.constant 0 : i32
    %c0_i32_0 = arith.constant 0 : i32
    %c0_i32_1 = arith.constant 0 : i32
    return %c0_i32, %c0_i32_0 : i32, i32
  }
  func.func @transform_20(%arg0: i32) -> (i32, i32) {
    %c0_i32 = arith.constant 0 : i32
    %c0_i32_0 = arith.constant 0 : i32
    %c0_i32_1 = arith.constant 0 : i32
    return %c0_i32, %c0_i32_0 : i32, i32
  }
  func.func @transform_21(%arg0: i32) -> (i32, i32) {
    %c0_i32 = arith.constant 0 : i32
    %c0_i32_0 = arith.constant 0 : i32
    %c0_i32_1 = arith.constant 0 : i32
    return %c0_i32, %c0_i32_0 : i32, i32
  }
}

</mosaic_0001>

<llo_original>
// kernel: tpu_custom_call.1
$region0: #{tpu_custom_call.1}
  #allocation0 [shape = 'u32[]', space=smem, size = 0x4, offset = 0x4, fixed_abs, tag = 'smem constant byte address 0x4 - core index']
  #allocation1 [shape = 'u32[144,128]{1,0:T(1,128)}', space=vmem, size = 0x12000, scoped, tag = 'internal scratch']
  #allocation2 [shape = 'f32[8,128]{1,0:T(8,128)}', space=vmem, size = 0x1000, scoped, tag = 'scratch operand']
  %s0 = inlined_call_operand.vmem [shape: bf16[64,25], index: 0, kind: input, shape index: {}]
  %s1 = inlined_call_operand.vmem [shape: bf16[8,64], index: 1, kind: input, shape index: {}]
  %s2 = inlined_call_operand.vmem [shape: bf16[8,12], index: 2, kind: input, shape index: {}]
  %s3 = inlined_call_operand.vmem [shape: f32[8,32], index: 3, kind: input, shape index: {}]
  %s4 = inlined_call_operand.vmem [shape: bf16[16,32], index: 4, kind: input, shape index: {}]
  %s5 = inlined_call_operand.vmem [shape: bf16[12,32], index: 5, kind: input, shape index: {}]
  %s6 = inlined_call_operand.vmem [shape: f32[1,32], index: 6, kind: input, shape index: {}]
  %s7 = inlined_call_operand.vmem [shape: bf16[32,32], index: 7, kind: input, shape index: {}]
  %s8 = inlined_call_operand.vmem [shape: f32[1,32], index: 8, kind: input, shape index: {}]
  %s9 = inlined_call_operand.vmem [shape: bf16[32,32], index: 9, kind: input, shape index: {}]
  %s10 = inlined_call_operand.vmem [shape: f32[1,32], index: 10, kind: input, shape index: {}]
  %s11 = inlined_call_operand.vmem [shape: bf16[32,96], index: 11, kind: input, shape index: {}]
  %s12 = inlined_call_operand.vmem [shape: bf16[12,96], index: 12, kind: input, shape index: {}]
  %s13 = inlined_call_operand.vmem [shape: bf16[96,24], index: 13, kind: input, shape index: {}]
  %s14 = inlined_call_operand.vmem [shape: bf16[64,32], index: 14, kind: input, shape index: {}]
  %s15 = inlined_call_operand.vmem [shape: f32[1,32], index: 15, kind: input, shape index: {}]
  %s16 = inlined_call_operand.vmem [shape: bf16[32,32], index: 16, kind: input, shape index: {}]
  %s17 = inlined_call_operand.vmem [shape: f32[1,32], index: 17, kind: input, shape index: {}]
  %s18 = inlined_call_operand.vmem [shape: bf16[12,24], index: 18, kind: input, shape index: {}]
  %s19 = inlined_call_operand.vmem [shape: f32[1,24], index: 19, kind: input, shape index: {}]
  %s20 = inlined_call_operand.hbm [shape: f32[8,32], index: 20, kind: output, shape index: {0}]
  %s21 = inlined_call_operand.hbm [shape: f32[8,24], index: 21, kind: output, shape index: {1}]
  %22 = xla_tuple %s20, %s21
  %s23 = sld [smem:[#allocation0]]
  $region106: #{tpu_custom_call.1} parent=0
    _
  %s25 = ssub.s32 1, %s23
  %s26 = scalar_select 0, %s25, %s23
  $region1: #{tpu_custom_call.1} parent=0
    #allocation3 [shape = 'u8[4096]{0}', space=vmem, size = 0x1000, scoped, tag = 'output window, operand 0, single buffered']
    #allocation4 [shape = 's32[1]{0}', space=sflag, size = 0x4, scoped, tag = 'scoped memory for tpu_custom_call.1']
    #allocation5 [shape = 'u8[4096]{0}', space=vmem, size = 0x1000, scoped, tag = 'output window, operand 1, single buffered']
    #allocation6 [shape = 's32[1]{0}', space=sflag, size = 0x4, scoped, tag = 'scoped memory for tpu_custom_call.1']
    %27 = vsyncpa [#allocation4], 0
    %28 = vsyncpa [#allocation6], 0
    // Predicated region
    $region2: #{tpu_custom_call.1} parent=1 // pred_check
      _
    $region3: #{tpu_custom_call.1} parent=1 // pred_check_branch
      %30 = sbr.rel (0) target = $region5
    $region4: #{tpu_custom_call.1} parent=1 // pred_region
      _
    $region5: #{tpu_custom_call.1} parent=1 // pred_fallthru
      _
    // Predicated region
    $region6: #{tpu_custom_call.1} parent=1 // pred_check
      _
    $region7: #{tpu_custom_call.1} parent=1 // pred_check_branch
      %32 = sbr.rel (0) target = $region9
    $region8: #{tpu_custom_call.1} parent=1 // pred_region
      _
    $region9: #{tpu_custom_call.1} parent=1 // pred_fallthru
      _
    // Predicated region
    $region10: #{tpu_custom_call.1} parent=1 // pred_check
      _
    $region11: #{tpu_custom_call.1} parent=1 // pred_check_branch
      %34 = sbr.rel (0) target = $region13
    $region12: #{tpu_custom_call.1} parent=1 // pred_region
      _
    $region13: #{tpu_custom_call.1} parent=1 // pred_fallthru
      _
    // Predicated region
    $region14: #{tpu_custom_call.1} parent=1 // pred_check
      _
    $region15: #{tpu_custom_call.1} parent=1 // pred_check_branch
      %36 = sbr.rel (0) target = $region17
    $region16: #{tpu_custom_call.1} parent=1 // pred_region
      _
    $region17: #{tpu_custom_call.1} parent=1 // pred_fallthru
      _
    // Predicated region
    $region18: #{tpu_custom_call.1} parent=1 // pred_check
      _
    $region19: #{tpu_custom_call.1} parent=1 // pred_check_branch
      %38 = sbr.rel (0) target = $region21
    $region20: #{tpu_custom_call.1} parent=1 // pred_region
      _
    $region21: #{tpu_custom_call.1} parent=1 // pred_fallthru
      _
    // Predicated region
    $region22: #{tpu_custom_call.1} parent=1 // pred_check
      _
    $region23: #{tpu_custom_call.1} parent=1 // pred_check_branch
      %40 = sbr.rel (0) target = $region25
    $region24: #{tpu_custom_call.1} parent=1 // pred_region
      _
    $region25: #{tpu_custom_call.1} parent=1 // pred_fallthru
      _
    // Predicated region
    $region26: #{tpu_custom_call.1} parent=1 // pred_check
      _
    $region27: #{tpu_custom_call.1} parent=1 // pred_check_branch
      %42 = sbr.rel (0) target = $region29
    $region28: #{tpu_custom_call.1} parent=1 // pred_region
      _
    $region29: #{tpu_custom_call.1} parent=1 // pred_fallthru
      _
    // Predicated region
    $region30: #{tpu_custom_call.1} parent=1 // pred_check
      _
    $region31: #{tpu_custom_call.1} parent=1 // pred_check_branch
      %44 = sbr.rel (0) target = $region33
    $region32: #{tpu_custom_call.1} parent=1 // pred_region
      _
    $region33: #{tpu_custom_call.1} parent=1 // pred_fallthru
      _
    // Predicated region
    $region34: #{tpu_custom_call.1} parent=1 // pred_check
      _
    $region35: #{tpu_custom_call.1} parent=1 // pred_check_branch
      %46 = sbr.rel (0) target = $region37
    $region36: #{tpu_custom_call.1} parent=1 // pred_region
      _
    $region37: #{tpu_custom_call.1} parent=1 // pred_fallthru
      _
    // Predicated region
    $region38: #{tpu_custom_call.1} parent=1 // pred_check
      _
    $region39: #{tpu_custom_call.1} parent=1 // pred_check_branch
      %48 = sbr.rel (0) target = $region41
    $region40: #{tpu_custom_call.1} parent=1 // pred_region
      _
    $region41: #{tpu_custom_call.1} parent=1 // pred_fallthru
      _
    // Predicated region
    $region42: #{tpu_custom_call.1} parent=1 // pred_check
      _
    $region43: #{tpu_custom_call.1} parent=1 // pred_check_branch
      %50 = sbr.rel (0) target = $region45
    $region44: #{tpu_custom_call.1} parent=1 // pred_region
      _
    $region45: #{tpu_custom_call.1} parent=1 // pred_fallthru
      _
    // Predicated region
    $region46: #{tpu_custom_call.1} parent=1 // pred_check
      _
    $region47: #{tpu_custom_call.1} parent=1 // pred_check_branch
      %52 = sbr.rel (0) target = $region49
    $region48: #{tpu_custom_call.1} parent=1 // pred_region
      _
    $region49: #{tpu_custom_call.1} parent=1 // pred_fallthru
      _
    // Predicated region
    $region50: #{tpu_custom_call.1} parent=1 // pred_check
      _
    $region51: #{tpu_custom_call.1} parent=1 // pred_check_branch
      %54 = sbr.rel (0) target = $region53
    $region52: #{tpu_custom_call.1} parent=1 // pred_region
      _
    $region53: #{tpu_custom_call.1} parent=1 // pred_fallthru
      _
    // Predicated region
    $region54: #{tpu_custom_call.1} parent=1 // pred_check
      _
    $region55: #{tpu_custom_call.1} parent=1 // pred_check_branch
      %56 = sbr.rel (0) target = $region57
    $region56: #{tpu_custom_call.1} parent=1 // pred_region
      _
    $region57: #{tpu_custom_call.1} parent=1 // pred_fallthru
      _
    // Predicated region
    $region58: #{tpu_custom_call.1} parent=1 // pred_check
      _
    $region59: #{tpu_custom_call.1} parent=1 // pred_check_branch
      %58 = sbr.rel (0) target = $region61
    $region60: #{tpu_custom_call.1} parent=1 // pred_region
      _
    $region61: #{tpu_custom_call.1} parent=1 // pred_fallthru
      _
    // Predicated region
    $region62: #{tpu_custom_call.1} parent=1 // pred_check
      _
    $region63: #{tpu_custom_call.1} parent=1 // pred_check_branch
      %60 = sbr.rel (0) target = $region65
    $region64: #{tpu_custom_call.1} parent=1 // pred_region
      _
    $region65: #{tpu_custom_call.1} parent=1 // pred_fallthru
      _
    // Predicated region
    $region66: #{tpu_custom_call.1} parent=1 // pred_check
      _
    $region67: #{tpu_custom_call.1} parent=1 // pred_check_branch
      %62 = sbr.rel (0) target = $region69
    $region68: #{tpu_custom_call.1} parent=1 // pred_region
      _
    $region69: #{tpu_custom_call.1} parent=1 // pred_fallthru
      _
    // Predicated region
    $region70: #{tpu_custom_call.1} parent=1 // pred_check
      _
    $region71: #{tpu_custom_call.1} parent=1 // pred_check_branch
      %64 = sbr.rel (0) target = $region73
    $region72: #{tpu_custom_call.1} parent=1 // pred_region
      _
    $region73: #{tpu_custom_call.1} parent=1 // pred_fallthru
      _
    // Predicated region
    $region74: #{tpu_custom_call.1} parent=1 // pred_check
      _
    $region75: #{tpu_custom_call.1} parent=1 // pred_check_branch
      %66 = sbr.rel (0) target = $region77
    $region76: #{tpu_custom_call.1} parent=1 // pred_region
      _
    $region77: #{tpu_custom_call.1} parent=1 // pred_fallthru
      _
    // Predicated region
    $region78: #{tpu_custom_call.1} parent=1 // pred_check
      _
    $region79: #{tpu_custom_call.1} parent=1 // pred_check_branch
      %68 = sbr.rel (0) target = $region81
    $region80: #{tpu_custom_call.1} parent=1 // pred_region
      _
    $region81: #{tpu_custom_call.1} parent=1 // pred_fallthru
      _
    %p70 = scmp.eq.s32.totalorder 0, 0
    // Predicated region
    $region82: #{tpu_custom_call.1} parent=1 // pred_check
      %p71 = pneg %p70
    $region83: #{tpu_custom_call.1} parent=1 // pred_check_branch
      %73 = sbr.rel (%p71) target = $region85
    $region84: #{tpu_custom_call.1} parent=1 // pred_region
      %74 = vst [vmem:[#allocation2] sm:$0xff] 0.0
    $region85: #{tpu_custom_call.1} parent=1 // pred_fallthru
      _
    %v75 = vld [vmem:[%s0] sm:$0xf]
    %v76 = vld [vmem:[%s0 + $0x4] sm:$0xf]
    %v77 = vld [vmem:[%s0 + $0x8] sm:$0xf]
    %v78 = vld [vmem:[%s0 + $0xc] sm:$0xf]
    %v79 = vld [vmem:[%s0 + $0x10] sm:$0xf]
    %v80 = vld [vmem:[%s0 + $0x14] sm:$0xf]
    %v81 = vld [vmem:[%s0 + $0x18] sm:$0xf]
    %v82 = vld [vmem:[%s0 + $0x1c] sm:$0xf]
    %v83 = vunpack.c.l.bf16 %v75
    %v84 = vunpack.c.l.bf16 %v76
    %v85 = vunpack.c.l.bf16 %v77
    %v86 = vunpack.c.l.bf16 %v78
    %v87 = vunpack.c.l.bf16 %v79
    %v88 = vunpack.c.l.bf16 %v80
    %v89 = vunpack.c.l.bf16 %v81
    %v90 = vunpack.c.l.bf16 %v82
    %v91 = vld [vmem:[%s2] sm:$0xf]
    %v100 = vunpack.c.l.b16 %v75
    %v101 = vunpack.c.l.b16 %v76
    %v102 = vunpack.c.l.b16 %v77
    %v103 = vunpack.c.l.b16 %v78
    %v104 = vunpack.c.l.b16 %v79
    %v105 = vunpack.c.l.b16 %v80
    %v106 = vunpack.c.l.b16 %v81
    %v107 = vunpack.c.l.b16 %v82
    %v108 = vpack.c.b16 %v101, %v100
    %v109 = vpack.c.b16 %v103, %v102
    %v110 = vpack.c.b16 %v105, %v104
    %v111 = vpack.c.b16 %v107, %v106
    %112 = vrot.lane.b32.xlu0 %v108, 112
    %v113 = vpop.permute.xlu0 %112
    %114 = vrot.lane.b32.xlu0 %v109, 112
    %v115 = vpop.permute.xlu0 %114
    %116 = vrot.lane.b32.xlu0 %v110, 112
    %v117 = vpop.permute.xlu0 %116
    %118 = vrot.lane.b32.xlu0 %v111, 112
    %v119 = vpop.permute.xlu0 %118
    %vm120 = vcmask 64512
    %v122 = vsel %vm120, %v113, 0
    %v125 = vsel %vm120, %v115, 0
    %v128 = vsel %vm120, %v117, 0
    %v131 = vsel %vm120, %v119, 0
    %vm133 = vcmask 1043456
    %v135 = vsel %vm133, %v91, 0
    %137 = vmatprep.subr.bf16.mxu0 0
    %138 = vmatpush1.bf16.msra.mxu0 0
    %139 = vmatprep.subr.bf16.mxu0 0
    %140 = vmatpush1.bf16.msra.mxu0 0
    %141 = vmatprep.subr.bf16.mxu0 0
    %142 = vmatpush1.bf16.msra.mxu0 0
    %143 = vmatprep.subr.bf16.mxu0 0
    %144 = vmatpush1.bf16.msra.mxu0 0
    %145 = vmatprep.subr.bf16.mxu0 0
    %146 = vmatpush1.bf16.msra.mxu0 0
    %147 = vmatprep.subr.bf16.mxu0 0
    %148 = vmatpush1.bf16.msra.mxu0 0
    %149 = vmatprep.subr.bf16.mxu0 0
    %150 = vmatpush1.bf16.msra.mxu0 0
    %151 = vmatprep.subr.bf16.mxu0 0
    %152 = vmatpush1.bf16.msra.mxu0 %v135
    %153 = vmatprep.subr.bf16.mxu0 0
    %154 = vmatpush2.bf16.msra.mxu0 0
    %155 = vmatprep.subr.bf16.mxu0 0
    %156 = vmatpush2.bf16.msra.mxu0 0
    %157 = vmatprep.subr.bf16.mxu0 0
    %158 = vmatpush2.bf16.msra.mxu0 0
    %159 = vmatprep.subr.bf16.mxu0 0
    %160 = vmatpush2.bf16.msra.mxu0 0
    %161 = vmatprep.subr.bf16.mxu0 0
    %162 = vmatpush2.bf16.msra.mxu0 0
    %163 = vmatprep.subr.bf16.mxu0 0
    %164 = vmatpush2.bf16.msra.mxu0 0
    %165 = vmatprep.subr.bf16.mxu0 0
    %166 = vmatpush2.bf16.msra.mxu0 0
    %167 = vmatprep.subr.bf16.mxu0 0
    %168 = vmatpush2.bf16.msra.mxu0 0
    %169 = vmatprep.mubr.bf16.mxu0 0
    %170 = vmatmul.mubr.bf16.gmra.mxu0 %v122
    %v171 = vpop.f32.mrf.mxu0
    %v172 = vadd.f32 0.0, %v171
    %v173 = vpop.f32.mrf.mxu0
    %v174 = vpop.f32.mrf.mxu0
    %v175 = vadd.f32 0.0, %v174
    %v176 = vpop.f32.mrf.mxu0
    %177 = vmatprep.mubr.bf16.mxu0 0
    %178 = vmatmul.mubr.bf16.gmra.mxu0 %v125
    %v179 = vpop.f32.mrf.mxu0
    %v180 = vadd.f32 0.0, %v179
    %v181 = vpop.f32.mrf.mxu0
    %v182 = vpop.f32.mrf.mxu0
    %v183 = vadd.f32 0.0, %v182
    %v184 = vpop.f32.mrf.mxu0
    %185 = vmatprep.mubr.bf16.mxu0 0
    %186 = vmatmul.mubr.bf16.gmra.mxu0 %v128
    %v187 = vpop.f32.mrf.mxu0
    %v188 = vadd.f32 0.0, %v187
    %v189 = vpop.f32.mrf.mxu0
    %v190 = vpop.f32.mrf.mxu0
    %v191 = vadd.f32 0.0, %v190
    %v192 = vpop.f32.mrf.mxu0
    %193 = vmatprep.mubr.bf16.mxu0 0
    %194 = vmatmul.mubr.bf16.gmra.mxu0 %v131
    %v195 = vpop.f32.mrf.mxu0
    %v196 = vadd.f32 0.0, %v195
    %v197 = vpop.f32.mrf.mxu0
    %v198 = vpop.f32.mrf.mxu0
    %v199 = vadd.f32 0.0, %v198
    %v200 = vpop.f32.mrf.mxu0
    %201 = vdwg.mxu0
    %v202 = vld [vmem:[%s4] sm:$0xf]
    %v203 = vld [vmem:[%s4 + $0x4] sm:$0xf]
    %v204 = vmul.f32 %v172, %v172
    %v205 = vmul.f32 %v175, %v175
    %v206 = vmul.f32 %v180, %v180
    %v207 = vmul.f32 %v183, %v183
    %v208 = vmul.f32 %v188, %v188
    %v209 = vmul.f32 %v191, %v191
    %v210 = vmul.f32 %v196, %v196
    %v211 = vmul.f32 %v199, %v199
    %v212 = vld [vmem:[%s5] sm:$0xf]
    %v213 = vld [vmem:[%s5 + $0x4] sm:$0x3]
    %v214 = vpack.c.bf16 %v205, %v204
    %v215 = vpack.c.bf16 %v207, %v206
    %v216 = vpack.c.bf16 %v209, %v208
    %v217 = vpack.c.bf16 %v211, %v210
    %v220 = vunpack.c.l.b16 %v212
    %v221 = vunpack.c.l.b16 %v213
    %v222 = vpack.c.b16 %v221, %v220
    %vm223 = vcmask 97280
    %v225 = vsel %vm223, %v214, 0
    %v228 = vsel %vm223, %v215, 0
    %v231 = vsel %vm223, %v216, 0
    %v234 = vsel %vm223, %v217, 0
    %vm236 = vcmask 1045504
    %v238 = vsel %vm236, %v222, 0
    %240 = vmatprep.subr.bf16.mxu0 0
    %241 = vmatpush1.bf16.msra.mxu0 0
    %242 = vmatprep.subr.bf16.mxu0 0
    %243 = vmatpush1.bf16.msra.mxu0 0
    %244 = vmatprep.subr.bf16.mxu0 0
    %245 = vmatpush1.bf16.msra.mxu0 0
    %246 = vmatprep.subr.bf16.mxu0 0
    %247 = vmatpush1.bf16.msra.mxu0 0
    %248 = vmatprep.subr.bf16.mxu0 0
    %249 = vmatpush1.bf16.msra.mxu0 0
    %250 = vmatprep.subr.bf16.mxu0 0
    %251 = vmatpush1.bf16.msra.mxu0 0
    %252 = vmatprep.subr.bf16.mxu0 0
    %253 = vmatpush1.bf16.msra.mxu0 0
    %254 = vmatprep.subr.bf16.mxu0 0
    %255 = vmatpush1.bf16.msra.mxu0 %v238
    %256 = vmatprep.subr.bf16.mxu0 0
    %257 = vmatpush2.bf16.msra.mxu0 0
    %258 = vmatprep.subr.bf16.mxu0 0
    %259 = vmatpush2.bf16.msra.mxu0 0
    %260 = vmatprep.subr.bf16.mxu0 0
    %261 = vmatpush2.bf16.msra.mxu0 0
    %262 = vmatprep.subr.bf16.mxu0 0
    %263 = vmatpush2.bf16.msra.mxu0 0
    %264 = vmatprep.subr.bf16.mxu0 0
    %265 = vmatpush2.bf16.msra.mxu0 0
    %266 = vmatprep.subr.bf16.mxu0 0
    %267 = vmatpush2.bf16.msra.mxu0 0
    %268 = vmatprep.subr.bf16.mxu0 0
    %269 = vmatpush2.bf16.msra.mxu0 0
    %270 = vmatprep.subr.bf16.mxu0 0
    %271 = vmatpush2.bf16.msra.mxu0 0
    %272 = vmatprep.mubr.bf16.mxu0 0
    %273 = vmatmul.mubr.bf16.gmra.mxu0 %v225
    %v274 = vpop.f32.mrf.mxu0
    %v275 = vadd.f32 0.0, %v274
    %v276 = vpop.f32.mrf.mxu0
    %v277 = vpop.f32.mrf.mxu0
    %v278 = vadd.f32 0.0, %v277
    %v279 = vpop.f32.mrf.mxu0
    %280 = vmatprep.mubr.bf16.mxu0 0
    %281 = vmatmul.mubr.bf16.gmra.mxu0 %v228
    %v282 = vpop.f32.mrf.mxu0
    %v283 = vadd.f32 0.0, %v282
    %v284 = vpop.f32.mrf.mxu0
    %v285 = vpop.f32.mrf.mxu0
    %v286 = vadd.f32 0.0, %v285
    %v287 = vpop.f32.mrf.mxu0
    %288 = vmatprep.mubr.bf16.mxu0 0
    %289 = vmatmul.mubr.bf16.gmra.mxu0 %v231
    %v290 = vpop.f32.mrf.mxu0
    %v291 = vadd.f32 0.0, %v290
    %v292 = vpop.f32.mrf.mxu0
    %v293 = vpop.f32.mrf.mxu0
    %v294 = vadd.f32 0.0, %v293
    %v295 = vpop.f32.mrf.mxu0
    %296 = vmatprep.mubr.bf16.mxu0 0
    %297 = vmatmul.mubr.bf16.gmra.mxu0 %v234
    %v298 = vpop.f32.mrf.mxu0
    %v299 = vadd.f32 0.0, %v298
    %v300 = vpop.f32.mrf.mxu0
    %v301 = vpop.f32.mrf.mxu0
    %v302 = vadd.f32 0.0, %v301
    %v303 = vpop.f32.mrf.mxu0
    %304 = vdwg.mxu0
    %v307 = vunpack.c.l.b16 %v202
    %v308 = vunpack.c.l.b16 %v203
    %v309 = vpack.c.b16 %v308, %v307
    %vm311 = vcmask 130048
    %v313 = vsel %vm311, %v108, 0
    %v316 = vsel %vm311, %v109, 0
    %v319 = vsel %vm311, %v110, 0
    %v322 = vsel %vm311, %v111, 0
    %324 = vmatprep.subr.bf16.mxu0 0
    %325 = vmatpush1.bf16.msra.mxu0 0
    %326 = vmatprep.subr.bf16.mxu0 0
    %327 = vmatpush1.bf16.msra.mxu0 0
    %328 = vmatprep.subr.bf16.mxu0 0
    %329 = vmatpush1.bf16.msra.mxu0 0
    %330 = vmatprep.subr.bf16.mxu0 0
    %331 = vmatpush1.bf16.msra.mxu0 0
    %332 = vmatprep.subr.bf16.mxu0 0
    %333 = vmatpush1.bf16.msra.mxu0 0
    %334 = vmatprep.subr.bf16.mxu0 0
    %335 = vmatpush1.bf16.msra.mxu0 0
    %336 = vmatprep.subr.bf16.mxu0 0
    %337 = vmatpush1.bf16.msra.mxu0 0
    %338 = vmatprep.subr.bf16.mxu0 0
    %339 = vmatpush1.bf16.msra.mxu0 %v309
    %340 = vmatprep.subr.bf16.mxu0 0
    %341 = vmatpush2.bf16.msra.mxu0 0
    %342 = vmatprep.subr.bf16.mxu0 0
    %343 = vmatpush2.bf16.msra.mxu0 0
    %344 = vmatprep.subr.bf16.mxu0 0
    %345 = vmatpush2.bf16.msra.mxu0 0
    %346 = vmatprep.subr.bf16.mxu0 0
    %347 = vmatpush2.bf16.msra.mxu0 0
    %348 = vmatprep.subr.bf16.mxu0 0
    %349 = vmatpush2.bf16.msra.mxu0 0
    %350 = vmatprep.subr.bf16.mxu0 0
    %351 = vmatpush2.bf16.msra.mxu0 0
    %352 = vmatprep.subr.bf16.mxu0 0
    %353 = vmatpush2.bf16.msra.mxu0 0
    %354 = vmatprep.subr.bf16.mxu0 0
    %355 = vmatpush2.bf16.msra.mxu0 0
    %356 = vmatprep.mubr.bf16.mxu0 0
    %357 = vmatmul.mubr.bf16.gmra.mxu0 %v313
    %v358 = vpop.f32.mrf.mxu0
    %v359 = vadd.f32 %v275, %v358
    %v360 = vpop.f32.mrf.mxu0
    %v361 = vpop.f32.mrf.mxu0
    %v362 = vadd.f32 %v278, %v361
    %v363 = vpop.f32.mrf.mxu0
    %364 = vmatprep.mubr.bf16.mxu0 0
    %365 = vmatmul.mubr.bf16.gmra.mxu0 %v316
    %v366 = vpop.f32.mrf.mxu0
    %v367 = vadd.f32 %v283, %v366
    %v368 = vpop.f32.mrf.mxu0
    %v369 = vpop.f32.mrf.mxu0
    %v370 = vadd.f32 %v286, %v369
    %v371 = vpop.f32.mrf.mxu0
    %372 = vmatprep.mubr.bf16.mxu0 0
    %373 = vmatmul.mubr.bf16.gmra.mxu0 %v319
    %v374 = vpop.f32.mrf.mxu0
    %v375 = vadd.f32 %v291, %v374
    %v376 = vpop.f32.mrf.mxu0
    %v377 = vpop.f32.mrf.mxu0
    %v378 = vadd.f32 %v294, %v377
    %v379 = vpop.f32.mrf.mxu0
    %380 = vmatprep.mubr.bf16.mxu0 0
    %381 = vmatmul.mubr.bf16.gmra.mxu0 %v322
    %v382 = vpop.f32.mrf.mxu0
    %v383 = vadd.f32 %v299, %v382
    %v384 = vpop.f32.mrf.mxu0
    %v385 = vpop.f32.mrf.mxu0
    %v386 = vadd.f32 %v302, %v385
    %v387 = vpop.f32.mrf.mxu0
    %388 = vdwg.mxu0
    %v389 = vld [vmem:[%s6] sm:$0x1]
    %v391 = vlaneseq
    %v392 = vshrl.u32 %v391, 7
    %v393 = vsub.s32 0, %v392
    %v394 = vrot.slane %v389, %v393
    %v396 = vadd.f32 %v359, %v394
    %v397 = vadd.f32 %v362, %v394
    %v398 = vadd.f32 %v367, %v394
    %v399 = vadd.f32 %v370, %v394
    %v400 = vadd.f32 %v375, %v394
    %v401 = vadd.f32 %v378, %v394
    %v402 = vadd.f32 %v383, %v394
    %v403 = vadd.f32 %v386, %v394
    %v404 = vmax.f32 %v396, 0.0
    %v405 = vmax.f32 %v397, 0.0
    %v406 = vmax.f32 %v398, 0.0
    %v407 = vmax.f32 %v399, 0.0
    %v408 = vmax.f32 %v400, 0.0
    %v409 = vmax.f32 %v401, 0.0
    %v410 = vmax.f32 %v402, 0.0
    %v411 = vmax.f32 %v403, 0.0
    %v412 = vld [vmem:[%s7] sm:$0xf]
    %v413 = vld [vmem:[%s7 + $0x4] sm:$0xf]
    %v414 = vld [vmem:[%s7 + $0x8] sm:$0xf]
    %v415 = vld [vmem:[%s7 + $0xc] sm:$0xf]
    %v416 = vpack.c.bf16 %v405, %v404
    %v417 = vpack.c.bf16 %v407, %v406
    %v418 = vpack.c.bf16 %v409, %v408
    %v419 = vpack.c.bf16 %v411, %v410
    %v420 = vld [vmem:[%s8] sm:$0x1]
    %v422 = vlaneseq
    %v423 = vshrl.u32 %v422, 7
    %v424 = vsub.s32 0, %v423
    %v425 = vrot.slane %v420, %v424
    %v431 = vunpack.c.l.b16 %v412
    %v432 = vunpack.c.l.b16 %v413
    %v433 = vunpack.c.l.b16 %v414
    %v434 = vunpack.c.l.b16 %v415
    %v435 = vpack.c.b16 %v432, %v431
    %v436 = vpack.c.b16 %v434, %v433
    %vm439 = vcmask 261120
    %v441 = vsel %vm439, %v416, 0
    %v444 = vsel %vm439, %v417, 0
    %v447 = vsel %vm439, %v418, 0
    %v450 = vsel %vm439, %v419, 0
    %452 = vmatprep.subr.bf16.mxu0 0
    %453 = vmatpush1.bf16.msra.mxu0 0
    %454 = vmatprep.subr.bf16.mxu0 0
    %455 = vmatpush1.bf16.msra.mxu0 0
    %456 = vmatprep.subr.bf16.mxu0 0
    %457 = vmatpush1.bf16.msra.mxu0 0
    %458 = vmatprep.subr.bf16.mxu0 0
    %459 = vmatpush1.bf16.msra.mxu0 0
    %460 = vmatprep.subr.bf16.mxu0 0
    %461 = vmatpush1.bf16.msra.mxu0 0
    %462 = vmatprep.subr.bf16.mxu0 0
    %463 = vmatpush1.bf16.msra.mxu0 0
    %464 = vmatprep.subr.bf16.mxu0 0
    %465 = vmatpush1.bf16.msra.mxu0 %v436
    %466 = vmatprep.subr.bf16.mxu0 0
    %467 = vmatpush1.bf16.msra.mxu0 %v435
    %468 = vmatprep.subr.bf16.mxu0 0
    %469 = vmatpush2.bf16.msra.mxu0 0
    %470 = vmatprep.subr.bf16.mxu0 0
    %471 = vmatpush2.bf16.msra.mxu0 0
    %472 = vmatprep.subr.bf16.mxu0 0
    %473 = vmatpush2.bf16.msra.mxu0 0
    %474 = vmatprep.subr.bf16.mxu0 0
    %475 = vmatpush2.bf16.msra.mxu0 0
    %476 = vmatprep.subr.bf16.mxu0 0
    %477 = vmatpush2.bf16.msra.mxu0 0
    %478 = vmatprep.subr.bf16.mxu0 0
    %479 = vmatpush2.bf16.msra.mxu0 0
    %480 = vmatprep.subr.bf16.mxu0 0
    %481 = vmatpush2.bf16.msra.mxu0 0
    %482 = vmatprep.subr.bf16.mxu0 0
    %483 = vmatpush2.bf16.msra.mxu0 0
    %484 = vmatprep.mubr.bf16.mxu0 0
    %485 = vmatmul.mubr.bf16.gmra.mxu0 %v441
    %v486 = vpop.f32.mrf.mxu0
    %v487 = vadd.f32 %v425, %v486
    %v488 = vpop.f32.mrf.mxu0
    %v489 = vpop.f32.mrf.mxu0
    %v490 = vadd.f32 %v425, %v489
    %v491 = vpop.f32.mrf.mxu0
    %492 = vmatprep.mubr.bf16.mxu0 0
    %493 = vmatmul.mubr.bf16.gmra.mxu0 %v444
    %v494 = vpop.f32.mrf.mxu0
    %v495 = vadd.f32 %v425, %v494
    %v496 = vpop.f32.mrf.mxu0
    %v497 = vpop.f32.mrf.mxu0
    %v498 = vadd.f32 %v425, %v497
    %v499 = vpop.f32.mrf.mxu0
    %500 = vmatprep.mubr.bf16.mxu0 0
    %501 = vmatmul.mubr.bf16.gmra.mxu0 %v447
    %v502 = vpop.f32.mrf.mxu0
    %v503 = vadd.f32 %v425, %v502
    %v504 = vpop.f32.mrf.mxu0
    %v505 = vpop.f32.mrf.mxu0
    %v506 = vadd.f32 %v425, %v505
    %v507 = vpop.f32.mrf.mxu0
    %508 = vmatprep.mubr.bf16.mxu0 0
    %509 = vmatmul.mubr.bf16.gmra.mxu0 %v450
    %v510 = vpop.f32.mrf.mxu0
    %v511 = vadd.f32 %v425, %v510
    %v512 = vpop.f32.mrf.mxu0
    %v513 = vpop.f32.mrf.mxu0
    %v514 = vadd.f32 %v425, %v513
    %v515 = vpop.f32.mrf.mxu0
    %516 = vdwg.mxu0
    %v517 = vmax.f32 %v487, 0.0
    %v518 = vmax.f32 %v490, 0.0
    %v519 = vmax.f32 %v495, 0.0
    %v520 = vmax.f32 %v498, 0.0
    %v521 = vmax.f32 %v503, 0.0
    %v522 = vmax.f32 %v506, 0.0
    %v523 = vmax.f32 %v511, 0.0
    %v524 = vmax.f32 %v514, 0.0
    %526 = vset.pattern.permute.xlu0 24
    %527 = vperm.xlu0 %526, %v83
    %v528 = vpop.permute.xlu0 %527
    %531 = vset.pattern.permute.xlu0 24
    %532 = vperm.xlu0 %531, %v84
    %v533 = vpop.permute.xlu0 %532
    %536 = vset.pattern.permute.xlu0 24
    %537 = vperm.xlu0 %536, %v85
    %v538 = vpop.permute.xlu0 %537
    %541 = vset.pattern.permute.xlu0 24
    %542 = vperm.xlu0 %541, %v86
    %v543 = vpop.permute.xlu0 %542
    %546 = vset.pattern.permute.xlu0 24
    %547 = vperm.xlu0 %546, %v87
    %v548 = vpop.permute.xlu0 %547
    %551 = vset.pattern.permute.xlu0 24
    %552 = vperm.xlu0 %551, %v88
    %v553 = vpop.permute.xlu0 %552
    %556 = vset.pattern.permute.xlu0 24
    %557 = vperm.xlu0 %556, %v89
    %v558 = vpop.permute.xlu0 %557
    %561 = vset.pattern.permute.xlu0 24
    %562 = vperm.xlu0 %561, %v90
    %v563 = vpop.permute.xlu0 %562
    %v565 = vmul.f32 %v517, %v528
    %v566 = vmul.f32 %v518, %v533
    %v567 = vmul.f32 %v519, %v538
    %v568 = vmul.f32 %v520, %v543
    %v569 = vmul.f32 %v521, %v548
    %v570 = vmul.f32 %v522, %v553
    %v571 = vmul.f32 %v523, %v558
    %v572 = vmul.f32 %v524, %v563
    %v573 = vld [vmem:[%s9] sm:$0xf]
    %v574 = vld [vmem:[%s9 + $0x4] sm:$0xf]
    %v575 = vld [vmem:[%s9 + $0x8] sm:$0xf]
    %v576 = vld [vmem:[%s9 + $0xc] sm:$0xf]
    %v577 = vpack.c.bf16 %v566, %v565
    %v578 = vpack.c.bf16 %v568, %v567
    %v579 = vpack.c.bf16 %v570, %v569
    %v580 = vpack.c.bf16 %v572, %v571
    %v581 = vld [vmem:[%s10] sm:$0x1]
    %v583 = vlaneseq
    %v584 = vshrl.u32 %v583, 7
    %v585 = vsub.s32 0, %v584
    %v586 = vrot.slane %v581, %v585
    %v592 = vunpack.c.l.b16 %v573
    %v593 = vunpack.c.l.b16 %v574
    %v594 = vunpack.c.l.b16 %v575
    %v595 = vunpack.c.l.b16 %v576
    %v596 = vpack.c.b16 %v593, %v592
    %v597 = vpack.c.b16 %v595, %v594
    %v601 = vsel %vm439, %v577, 0
    %v604 = vsel %vm439, %v578, 0
    %v607 = vsel %vm439, %v579, 0
    %v610 = vsel %vm439, %v580, 0
    %612 = vmatprep.subr.bf16.mxu0 0
    %613 = vmatpush1.bf16.msra.mxu0 0
    %614 = vmatprep.subr.bf16.mxu0 0
    %615 = vmatpush1.bf16.msra.mxu0 0
    %616 = vmatprep.subr.bf16.mxu0 0
    %617 = vmatpush1.bf16.msra.mxu0 0
    %618 = vmatprep.subr.bf16.mxu0 0
    %619 = vmatpush1.bf16.msra.mxu0 0
    %620 = vmatprep.subr.bf16.mxu0 0
    %621 = vmatpush1.bf16.msra.mxu0 0
    %622 = vmatprep.subr.bf16.mxu0 0
    %623 = vmatpush1.bf16.msra.mxu0 0
    %624 = vmatprep.subr.bf16.mxu0 0
    %625 = vmatpush1.bf16.msra.mxu0 %v597
    %626 = vmatprep.subr.bf16.mxu0 0
    %627 = vmatpush1.bf16.msra.mxu0 %v596
    %628 = vmatprep.subr.bf16.mxu0 0
    %629 = vmatpush2.bf16.msra.mxu0 0
    %630 = vmatprep.subr.bf16.mxu0 0
    %631 = vmatpush2.bf16.msra.mxu0 0
    %632 = vmatprep.subr.bf16.mxu0 0
    %633 = vmatpush2.bf16.msra.mxu0 0
    %634 = vmatprep.subr.bf16.mxu0 0
    %635 = vmatpush2.bf16.msra.mxu0 0
    %636 = vmatprep.subr.bf16.mxu0 0
    %637 = vmatpush2.bf16.msra.mxu0 0
    %638 = vmatprep.subr.bf16.mxu0 0
    %639 = vmatpush2.bf16.msra.mxu0 0
    %640 = vmatprep.subr.bf16.mxu0 0
    %641 = vmatpush2.bf16.msra.mxu0 0
    %642 = vmatprep.subr.bf16.mxu0 0
    %643 = vmatpush2.bf16.msra.mxu0 0
    %644 = vmatprep.mubr.bf16.mxu0 0
    %645 = vmatmul.mubr.bf16.gmra.mxu0 %v601
    %v646 = vpop.f32.mrf.mxu0
    %v647 = vadd.f32 %v586, %v646
    %v648 = vpop.f32.mrf.mxu0
    %v649 = vpop.f32.mrf.mxu0
    %v650 = vadd.f32 %v586, %v649
    %v651 = vpop.f32.mrf.mxu0
    %652 = vmatprep.mubr.bf16.mxu0 0
    %653 = vmatmul.mubr.bf16.gmra.mxu0 %v604
    %v654 = vpop.f32.mrf.mxu0
    %v655 = vadd.f32 %v586, %v654
    %v656 = vpop.f32.mrf.mxu0
    %v657 = vpop.f32.mrf.mxu0
    %v658 = vadd.f32 %v586, %v657
    %v659 = vpop.f32.mrf.mxu0
    %660 = vmatprep.mubr.bf16.mxu0 0
    %661 = vmatmul.mubr.bf16.gmra.mxu0 %v607
    %v662 = vpop.f32.mrf.mxu0
    %v663 = vadd.f32 %v586, %v662
    %v664 = vpop.f32.mrf.mxu0
    %v665 = vpop.f32.mrf.mxu0
    %v666 = vadd.f32 %v586, %v665
    %v667 = vpop.f32.mrf.mxu0
    %668 = vmatprep.mubr.bf16.mxu0 0
    %669 = vmatmul.mubr.bf16.gmra.mxu0 %v610
    %v670 = vpop.f32.mrf.mxu0
    %v671 = vadd.f32 %v586, %v670
    %v672 = vpop.f32.mrf.mxu0
    %v673 = vpop.f32.mrf.mxu0
    %v674 = vadd.f32 %v586, %v673
    %v675 = vpop.f32.mrf.mxu0
    %676 = vdwg.mxu0
    %v677 = vmax.f32 %v647, 0.0
    %v678 = vmax.f32 %v650, 0.0
    %v679 = vmax.f32 %v655, 0.0
    %v680 = vmax.f32 %v658, 0.0
    %v681 = vmax.f32 %v663, 0.0
    %v682 = vmax.f32 %v666, 0.0
    %v683 = vmax.f32 %v671, 0.0
    %v684 = vmax.f32 %v674, 0.0
    %v685 = vld [vmem:[%s11] sm:$0xf]
    %v686 = vld [vmem:[%s11 + $0x4] sm:$0xf]
    %v687 = vld [vmem:[%s11 + $0x8] sm:$0xf]
    %v688 = vld [vmem:[%s11 + $0xc] sm:$0xf]
    %v689 = vpack.c.bf16 %v678, %v677
    %v690 = vpack.c.bf16 %v680, %v679
    %v691 = vpack.c.bf16 %v682, %v681
    %v692 = vpack.c.bf16 %v684, %v683
    %v697 = vunpack.c.l.b16 %v685
    %v698 = vunpack.c.l.b16 %v686
    %v699 = vunpack.c.l.b16 %v687
    %v700 = vunpack.c.l.b16 %v688
    %v701 = vpack.c.b16 %v698, %v697
    %v702 = vpack.c.b16 %v700, %v699
    %v706 = vsel %vm439, %v689, 0
    %v709 = vsel %vm439, %v690, 0
    %v712 = vsel %vm439, %v691, 0
    %v715 = vsel %vm439, %v692, 0
    %717 = vmatprep.subr.bf16.mxu0 0
    %718 = vmatpush1.bf16.msra.mxu0 0
    %719 = vmatprep.subr.bf16.mxu0 0
    %720 = vmatpush1.bf16.msra.mxu0 0
    %721 = vmatprep.subr.bf16.mxu0 0
    %722 = vmatpush1.bf16.msra.mxu0 0
    %723 = vmatprep.subr.bf16.mxu0 0
    %724 = vmatpush1.bf16.msra.mxu0 0
    %725 = vmatprep.subr.bf16.mxu0 0
    %726 = vmatpush1.bf16.msra.mxu0 0
    %727 = vmatprep.subr.bf16.mxu0 0
    %728 = vmatpush1.bf16.msra.mxu0 0
    %729 = vmatprep.subr.bf16.mxu0 0
    %730 = vmatpush1.bf16.msra.mxu0 %v702
    %731 = vmatprep.subr.bf16.mxu0 0
    %732 = vmatpush1.bf16.msra.mxu0 %v701
    %733 = vmatprep.subr.bf16.mxu0 0
    %734 = vmatpush2.bf16.msra.mxu0 0
    %735 = vmatprep.subr.bf16.mxu0 0
    %736 = vmatpush2.bf16.msra.mxu0 0
    %737 = vmatprep.subr.bf16.mxu0 0
    %738 = vmatpush2.bf16.msra.mxu0 0
    %739 = vmatprep.subr.bf16.mxu0 0
    %740 = vmatpush2.bf16.msra.mxu0 0
    %741 = vmatprep.subr.bf16.mxu0 0
    %742 = vmatpush2.bf16.msra.mxu0 0
    %743 = vmatprep.subr.bf16.mxu0 0
    %744 = vmatpush2.bf16.msra.mxu0 0
    %745 = vmatprep.subr.bf16.mxu0 0
    %746 = vmatpush2.bf16.msra.mxu0 0
    %747 = vmatprep.subr.bf16.mxu0 0
    %748 = vmatpush2.bf16.msra.mxu0 0
    %749 = vmatprep.mubr.bf16.mxu0 0
    %750 = vmatmul.mubr.bf16.gmra.mxu0 %v706
    %v751 = vpop.f32.mrf.mxu0
    %v752 = vadd.f32 0.0, %v751
    %v753 = vpop.f32.mrf.mxu0
    %v754 = vpop.f32.mrf.mxu0
    %v755 = vadd.f32 0.0, %v754
    %v756 = vpop.f32.mrf.mxu0
    %757 = vmatprep.mubr.bf16.mxu0 0
    %758 = vmatmul.mubr.bf16.gmra.mxu0 %v709
    %v759 = vpop.f32.mrf.mxu0
    %v760 = vadd.f32 0.0, %v759
    %v761 = vpop.f32.mrf.mxu0
    %v762 = vpop.f32.mrf.mxu0
    %v763 = vadd.f32 0.0, %v762
    %v764 = vpop.f32.mrf.mxu0
    %765 = vmatprep.mubr.bf16.mxu0 0
    %766 = vmatmul.mubr.bf16.gmra.mxu0 %v712
    %v767 = vpop.f32.mrf.mxu0
    %v768 = vadd.f32 0.0, %v767
    %v769 = vpop.f32.mrf.mxu0
    %v770 = vpop.f32.mrf.mxu0
    %v771 = vadd.f32 0.0, %v770
    %v772 = vpop.f32.mrf.mxu0
    %773 = vmatprep.mubr.bf16.mxu0 0
    %774 = vmatmul.mubr.bf16.gmra.mxu0 %v715
    %v775 = vpop.f32.mrf.mxu0
    %v776 = vadd.f32 0.0, %v775
    %v777 = vpop.f32.mrf.mxu0
    %v778 = vpop.f32.mrf.mxu0
    %v779 = vadd.f32 0.0, %v778
    %v780 = vpop.f32.mrf.mxu0
    %781 = vdwg.mxu0
    %v782 = vmul.f32 %v752, %v528
    %v783 = vmul.f32 %v755, %v533
    %v784 = vmul.f32 %v760, %v538
    %v785 = vmul.f32 %v763, %v543
    %v786 = vmul.f32 %v768, %v548
    %v787 = vmul.f32 %v771, %v553
    %v788 = vmul.f32 %v776, %v558
    %v789 = vmul.f32 %v779, %v563
    %v790 = vld [vmem:[%s12] sm:$0xf]
    %v791 = vld [vmem:[%s12 + $0x4] sm:$0x3]
    %v792 = vpack.c.bf16 %v175, %v172
    %v793 = vpack.c.bf16 %v183, %v180
    %v794 = vpack.c.bf16 %v191, %v188
    %v795 = vpack.c.bf16 %v199, %v196
    %v798 = vunpack.c.l.b16 %v790
    %v799 = vunpack.c.l.b16 %v791
    %v800 = vpack.c.b16 %v799, %v798
    %v802 = vsel %vm223, %v792, 0
    %v805 = vsel %vm223, %v793, 0
    %v808 = vsel %vm223, %v794, 0
    %v811 = vsel %vm223, %v795, 0
    %v814 = vsel %vm236, %v800, 0
    %816 = vmatprep.subr.bf16.mxu0 0
    %817 = vmatpush1.bf16.msra.mxu0 0
    %818 = vmatprep.subr.bf16.mxu0 0
    %819 = vmatpush1.bf16.msra.mxu0 0
    %820 = vmatprep.subr.bf16.mxu0 0
    %821 = vmatpush1.bf16.msra.mxu0 0
    %822 = vmatprep.subr.bf16.mxu0 0
    %823 = vmatpush1.bf16.msra.mxu0 0
    %824 = vmatprep.subr.bf16.mxu0 0
    %825 = vmatpush1.bf16.msra.mxu0 0
    %826 = vmatprep.subr.bf16.mxu0 0
    %827 = vmatpush1.bf16.msra.mxu0 0
    %828 = vmatprep.subr.bf16.mxu0 0
    %829 = vmatpush1.bf16.msra.mxu0 0
    %830 = vmatprep.subr.bf16.mxu0 0
    %831 = vmatpush1.bf16.msra.mxu0 %v814
    %832 = vmatprep.subr.bf16.mxu0 0
    %833 = vmatpush2.bf16.msra.mxu0 0
    %834 = vmatprep.subr.bf16.mxu0 0
    %835 = vmatpush2.bf16.msra.mxu0 0
    %836 = vmatprep.subr.bf16.mxu0 0
    %837 = vmatpush2.bf16.msra.mxu0 0
    %838 = vmatprep.subr.bf16.mxu0 0
    %839 = vmatpush2.bf16.msra.mxu0 0
    %840 = vmatprep.subr.bf16.mxu0 0
    %841 = vmatpush2.bf16.msra.mxu0 0
    %842 = vmatprep.subr.bf16.mxu0 0
    %843 = vmatpush2.bf16.msra.mxu0 0
    %844 = vmatprep.subr.bf16.mxu0 0
    %845 = vmatpush2.bf16.msra.mxu0 0
    %846 = vmatprep.subr.bf16.mxu0 0
    %847 = vmatpush2.bf16.msra.mxu0 0
    %848 = vmatprep.mubr.bf16.mxu0 0
    %849 = vmatmul.mubr.bf16.gmra.mxu0 %v802
    %v850 = vpop.f32.mrf.mxu0
    %v851 = vadd.f32 0.0, %v850
    %v852 = vpop.f32.mrf.mxu0
    %v853 = vpop.f32.mrf.mxu0
    %v854 = vadd.f32 0.0, %v853
    %v855 = vpop.f32.mrf.mxu0
    %856 = vmatprep.mubr.bf16.mxu0 0
    %857 = vmatmul.mubr.bf16.gmra.mxu0 %v805
    %v858 = vpop.f32.mrf.mxu0
    %v859 = vadd.f32 0.0, %v858
    %v860 = vpop.f32.mrf.mxu0
    %v861 = vpop.f32.mrf.mxu0
    %v862 = vadd.f32 0.0, %v861
    %v863 = vpop.f32.mrf.mxu0
    %864 = vmatprep.mubr.bf16.mxu0 0
    %865 = vmatmul.mubr.bf16.gmra.mxu0 %v808
    %v866 = vpop.f32.mrf.mxu0
    %v867 = vadd.f32 0.0, %v866
    %v868 = vpop.f32.mrf.mxu0
    %v869 = vpop.f32.mrf.mxu0
    %v870 = vadd.f32 0.0, %v869
    %v871 = vpop.f32.mrf.mxu0
    %872 = vmatprep.mubr.bf16.mxu0 0
    %873 = vmatmul.mubr.bf16.gmra.mxu0 %v811
    %v874 = vpop.f32.mrf.mxu0
    %v875 = vadd.f32 0.0, %v874
    %v876 = vpop.f32.mrf.mxu0
    %v877 = vpop.f32.mrf.mxu0
    %v878 = vadd.f32 0.0, %v877
    %v879 = vpop.f32.mrf.mxu0
    %880 = vdwg.mxu0
    %v881 = vmul.f32 %v851, %v782
    %v882 = vmul.f32 %v854, %v783
    %v883 = vmul.f32 %v859, %v784
    %v884 = vmul.f32 %v862, %v785
    %v885 = vmul.f32 %v867, %v786
    %v886 = vmul.f32 %v870, %v787
    %v887 = vmul.f32 %v875, %v788
    %v888 = vmul.f32 %v878, %v789
    %897 = vrot.lane.b32.xlu0 %v881, 32
    %v898 = vpop.permute.xlu0 %897
    %899 = vrot.lane.b32.xlu0 %v882, 32
    %v900 = vpop.permute.xlu0 %899
    %901 = vrot.lane.b32.xlu0 %v883, 32
    %v902 = vpop.permute.xlu0 %901
    %903 = vrot.lane.b32.xlu0 %v884, 32
    %v904 = vpop.permute.xlu0 %903
    %905 = vrot.lane.b32.xlu0 %v885, 32
    %v906 = vpop.permute.xlu0 %905
    %907 = vrot.lane.b32.xlu0 %v886, 32
    %v908 = vpop.permute.xlu0 %907
    %909 = vrot.lane.b32.xlu0 %v887, 32
    %v910 = vpop.permute.xlu0 %909
    %911 = vrot.lane.b32.xlu0 %v888, 32
    %v912 = vpop.permute.xlu0 %911
    %v921 = vsel %vm439, %v565, %v898
    %v922 = vsel %vm439, %v566, %v900
    %v923 = vsel %vm439, %v567, %v902
    %v924 = vsel %vm439, %v568, %v904
    %v925 = vsel %vm439, %v569, %v906
    %v926 = vsel %vm439, %v570, %v908
    %v927 = vsel %vm439, %v571, %v910
    %v928 = vsel %vm439, %v572, %v912
    %v929 = vld [vmem:[#allocation2] sm:$0xff]
    %v930 = vld [vmem:[%s1] sm:$0xf]
    %v931 = vpack.c.bf16 %v922, %v921
    %v932 = vpack.c.bf16 %v924, %v923
    %v933 = vpack.c.bf16 %v926, %v925
    %v934 = vpack.c.bf16 %v928, %v927
    %vm935 = vcmask 523264
    %v937 = vsel %vm935, %v930, 0
    %939 = vmatprep.subr.bf16.mxu0 0
    %940 = vmatpush1.bf16.msra.mxu0 0
    %941 = vmatprep.subr.bf16.mxu0 0
    %942 = vmatpush1.bf16.msra.mxu0 0
    %943 = vmatprep.subr.bf16.mxu0 0
    %944 = vmatpush1.bf16.msra.mxu0 0
    %945 = vmatprep.subr.bf16.mxu0 0
    %946 = vmatpush1.bf16.msra.mxu0 0
    %947 = vmatprep.subr.bf16.mxu0 0
    %948 = vmatpush1.bf16.msra.mxu0 %v934
    %949 = vmatprep.subr.bf16.mxu0 0
    %950 = vmatpush1.bf16.msra.mxu0 %v933
    %951 = vmatprep.subr.bf16.mxu0 0
    %952 = vmatpush1.bf16.msra.mxu0 %v932
    %953 = vmatprep.subr.bf16.mxu0 0
    %954 = vmatpush1.bf16.msra.mxu0 %v931
    %955 = vmatprep.subr.bf16.mxu0 0
    %956 = vmatpush2.bf16.msra.mxu0 0
    %957 = vmatprep.subr.bf16.mxu0 0
    %958 = vmatpush2.bf16.msra.mxu0 0
    %959 = vmatprep.subr.bf16.mxu0 0
    %960 = vmatpush2.bf16.msra.mxu0 0
    %961 = vmatprep.subr.bf16.mxu0 0
    %962 = vmatpush2.bf16.msra.mxu0 0
    %963 = vmatprep.subr.bf16.mxu0 0
    %964 = vmatpush2.bf16.msra.mxu0 0
    %965 = vmatprep.subr.bf16.mxu0 0
    %966 = vmatpush2.bf16.msra.mxu0 0
    %967 = vmatprep.subr.bf16.mxu0 0
    %968 = vmatpush2.bf16.msra.mxu0 0
    %969 = vmatprep.subr.bf16.mxu0 0
    %970 = vmatpush2.bf16.msra.mxu0 0
    %971 = vmatprep.mubr.bf16.mxu0 0
    %972 = vmatmul.mubr.bf16.gmra.mxu0 %v937
    %v973 = vpop.f32.mrf.mxu0
    %v974 = vadd.f32 0.0, %v973
    %v975 = vpop.f32.mrf.mxu0
    %v976 = vpop.f32.mrf.mxu0
    %v977 = vpop.f32.mrf.mxu0
    %978 = vdwg.mxu0
    %v979 = vadd.f32 %v929, %v974
    %980 = vst [vmem:[#allocation2] sm:$0xff] %v979
    // Predicated region
    $region86: #{tpu_custom_call.1} parent=1 // pred_check
      %p981 = pneg %p70
    $region87: #{tpu_custom_call.1} parent=1 // pred_check_branch
      %983 = sbr.rel (%p981) target = $region89
    $region88: #{tpu_custom_call.1} parent=1 // pred_region
      %v984 = vld [vmem:[%s3] sm:$0xff]
      %v985 = vld [vmem:[#allocation2] sm:$0xff]
      %v986 = vld [vmem:[%s13] sm:$0xf]
      %v987 = vld [vmem:[%s13 + $0x4] sm:$0xf]
      %v988 = vld [vmem:[%s13 + $0x8] sm:$0xf]
      %v989 = vld [vmem:[%s13 + $0xc] sm:$0xf]
      %v990 = vld [vmem:[%s13 + $0x10] sm:$0xf]
      %v991 = vld [vmem:[%s13 + $0x14] sm:$0xf]
      %v992 = vld [vmem:[%s13 + $0x18] sm:$0xf]
      %v993 = vld [vmem:[%s13 + $0x1c] sm:$0xf]
      %v994 = vld [vmem:[%s13 + $0x20] sm:$0xf]
      %v995 = vld [vmem:[%s13 + $0x24] sm:$0xf]
      %v996 = vld [vmem:[%s13 + $0x28] sm:$0xf]
      %v997 = vld [vmem:[%s13 + $0x2c] sm:$0xf]
      %v998 = vpack.c.bf16 %v985, %v985
      %1000 = vrot.lane.b32.xlu0 %v998, 96
      %v1001 = vpop.permute.xlu0 %1000
      %v1014 = vunpack.c.l.b16 %v986
      %v1015 = vunpack.c.l.b16 %v987
      %v1016 = vunpack.c.l.b16 %v988
      %v1017 = vunpack.c.l.b16 %v989
      %v1018 = vunpack.c.l.b16 %v990
      %v1019 = vunpack.c.l.b16 %v991
      %v1020 = vunpack.c.l.b16 %v992
      %v1021 = vunpack.c.l.b16 %v993
      %v1022 = vunpack.c.l.b16 %v994
      %v1023 = vunpack.c.l.b16 %v995
      %v1024 = vunpack.c.l.b16 %v996
      %v1025 = vunpack.c.l.b16 %v997
      %v1026 = vpack.c.b16 %v1015, %v1014
      %v1027 = vpack.c.b16 %v1017, %v1016
      %v1028 = vpack.c.b16 %v1019, %v1018
      %v1029 = vpack.c.b16 %v1021, %v1020
      %v1030 = vpack.c.b16 %v1023, %v1022
      %v1031 = vpack.c.b16 %v1025, %v1024
      %vm1038 = vcmask 785408
      %v1040 = vsel %vm1038, %v1001, 0
      %1042 = vmatprep.subr.bf16.mxu0 0
      %1043 = vmatpush1.bf16.msra.mxu0 0
      %1044 = vmatprep.subr.bf16.mxu0 0
      %1045 = vmatpush1.bf16.msra.mxu0 0
      %1046 = vmatprep.subr.bf16.mxu0 0
      %1047 = vmatpush1.bf16.msra.mxu0 %v1031
      %1048 = vmatprep.subr.bf16.mxu0 0
      %1049 = vmatpush1.bf16.msra.mxu0 %v1030
      %1050 = vmatprep.subr.bf16.mxu0 0
      %1051 = vmatpush1.bf16.msra.mxu0 %v1029
      %1052 = vmatprep.subr.bf16.mxu0 0
      %1053 = vmatpush1.bf16.msra.mxu0 %v1028
      %1054 = vmatprep.subr.bf16.mxu0 0
      %1055 = vmatpush1.bf16.msra.mxu0 %v1027
      %1056 = vmatprep.subr.bf16.mxu0 0
      %1057 = vmatpush1.bf16.msra.mxu0 %v1026
      %1058 = vmatprep.subr.bf16.mxu0 0
      %1059 = vmatpush2.bf16.msra.mxu0 0
      %1060 = vmatprep.subr.bf16.mxu0 0
      %1061 = vmatpush2.bf16.msra.mxu0 0
      %1062 = vmatprep.subr.bf16.mxu0 0
      %1063 = vmatpush2.bf16.msra.mxu0 0
      %1064 = vmatprep.subr.bf16.mxu0 0
      %1065 = vmatpush2.bf16.msra.mxu0 0
      %1066 = vmatprep.subr.bf16.mxu0 0
      %1067 = vmatpush2.bf16.msra.mxu0 0
      %1068 = vmatprep.subr.bf16.mxu0 0
      %1069 = vmatpush2.bf16.msra.mxu0 0
      %1070 = vmatprep.subr.bf16.mxu0 0
      %1071 = vmatpush2.bf16.msra.mxu0 0
      %1072 = vmatprep.subr.bf16.mxu0 0
      %1073 = vmatpush2.bf16.msra.mxu0 0
      %1074 = vmatprep.mubr.bf16.mxu0 0
      %1075 = vmatmul.mubr.bf16.gmra.mxu0 %v1040
      %v1076 = vpop.f32.mrf.mxu0
      %v1077 = vadd.f32 0.0, %v1076
      %v1078 = vpop.f32.mrf.mxu0
      %v1079 = vpop.f32.mrf.mxu0
      %v1080 = vpop.f32.mrf.mxu0
      %1081 = vdwg.mxu0
      %v1082 = vld [vmem:[%s18] sm:$0xf]
      %v1083 = vld [vmem:[%s18 + $0x4] sm:$0x3]
      %v1084 = vld [vmem:[%s19] sm:$0x1]
      %v1086 = vlaneseq
      %v1087 = vshrl.u32 %v1086, 7
      %v1088 = vsub.s32 0, %v1087
      %v1089 = vrot.slane %v1084, %v1088
      %v1093 = vunpack.c.l.b16 %v1082
      %v1094 = vunpack.c.l.b16 %v1083
      %v1095 = vpack.c.b16 %v1094, %v1093
      %v1096 = vsel %vm223, %v91, 0
      %v1099 = vsel %vm236, %v1095, 0
      %1101 = vmatprep.subr.bf16.mxu0 0
      %1102 = vmatpush1.bf16.msra.mxu0 0
      %1103 = vmatprep.subr.bf16.mxu0 0
      %1104 = vmatpush1.bf16.msra.mxu0 0
      %1105 = vmatprep.subr.bf16.mxu0 0
      %1106 = vmatpush1.bf16.msra.mxu0 0
      %1107 = vmatprep.subr.bf16.mxu0 0
      %1108 = vmatpush1.bf16.msra.mxu0 0
      %1109 = vmatprep.subr.bf16.mxu0 0
      %1110 = vmatpush1.bf16.msra.mxu0 0
      %1111 = vmatprep.subr.bf16.mxu0 0
      %1112 = vmatpush1.bf16.msra.mxu0 0
      %1113 = vmatprep.subr.bf16.mxu0 0
      %1114 = vmatpush1.bf16.msra.mxu0 0
      %1115 = vmatprep.subr.bf16.mxu0 0
      %1116 = vmatpush1.bf16.msra.mxu0 %v1099
      %1117 = vmatprep.subr.bf16.mxu0 0
      %1118 = vmatpush2.bf16.msra.mxu0 0
      %1119 = vmatprep.subr.bf16.mxu0 0
      %1120 = vmatpush2.bf16.msra.mxu0 0
      %1121 = vmatprep.subr.bf16.mxu0 0
      %1122 = vmatpush2.bf16.msra.mxu0 0
      %1123 = vmatprep.subr.bf16.mxu0 0
      %1124 = vmatpush2.bf16.msra.mxu0 0
      %1125 = vmatprep.subr.bf16.mxu0 0
      %1126 = vmatpush2.bf16.msra.mxu0 0
      %1127 = vmatprep.subr.bf16.mxu0 0
      %1128 = vmatpush2.bf16.msra.mxu0 0
      %1129 = vmatprep.subr.bf16.mxu0 0
      %1130 = vmatpush2.bf16.msra.mxu0 0
      %1131 = vmatprep.subr.bf16.mxu0 0
      %1132 = vmatpush2.bf16.msra.mxu0 0
      %1133 = vmatprep.mubr.bf16.mxu0 0
      %1134 = vmatmul.mubr.bf16.gmra.mxu0 %v1096
      %v1135 = vpop.f32.mrf.mxu0
      %v1136 = vadd.f32 %v1089, %v1135
      %v1137 = vpop.f32.mrf.mxu0
      %v1138 = vpop.f32.mrf.mxu0
      %v1139 = vpop.f32.mrf.mxu0
      %1140 = vdwg.mxu0
      %v1141 = vadd.f32 %v1136, %v1077
      %vm1142 = vcmask 195584
      %1143 = vst.msk [vmem:[#allocation5] sm:$0xff] %vm1142, %v1141
      %1145 = vrot.lane.b32.xlu0 %v985, 32
      %v1146 = vpop.permute.xlu0 %1145
      %v1148 = vsel %vm439, %v984, %v1146
      %v1149 = vld [vmem:[%s14] sm:$0xf]
      %v1150 = vld [vmem:[%s14 + $0x4] sm:$0xf]
      %v1151 = vld [vmem:[%s14 + $0x8] sm:$0xf]
      %v1152 = vld [vmem:[%s14 + $0xc] sm:$0xf]
      %v1153 = vld [vmem:[%s14 + $0x10] sm:$0xf]
      %v1154 = vld [vmem:[%s14 + $0x14] sm:$0xf]
      %v1155 = vld [vmem:[%s14 + $0x18] sm:$0xf]
      %v1156 = vld [vmem:[%s14 + $0x1c] sm:$0xf]
      %v1157 = vpack.c.bf16 %v1148, %v1148
      %v1158 = vld [vmem:[%s15] sm:$0x1]
      %v1160 = vlaneseq
      %v1161 = vshrl.u32 %v1160, 7
      %v1162 = vsub.s32 0, %v1161
      %v1163 = vrot.slane %v1158, %v1162
      %v1173 = vunpack.c.l.b16 %v1149
      %v1174 = vunpack.c.l.b16 %v1150
      %v1175 = vunpack.c.l.b16 %v1151
      %v1176 = vunpack.c.l.b16 %v1152
      %v1177 = vunpack.c.l.b16 %v1153
      %v1178 = vunpack.c.l.b16 %v1154
      %v1179 = vunpack.c.l.b16 %v1155
      %v1180 = vunpack.c.l.b16 %v1156
      %v1181 = vpack.c.b16 %v1174, %v1173
      %v1182 = vpack.c.b16 %v1176, %v1175
      %v1183 = vpack.c.b16 %v1178, %v1177
      %v1184 = vpack.c.b16 %v1180, %v1179
      %v1190 = vsel %vm935, %v1157, 0
      %1192 = vmatprep.subr.bf16.mxu0 0
      %1193 = vmatpush1.bf16.msra.mxu0 0
      %1194 = vmatprep.subr.bf16.mxu0 0
      %1195 = vmatpush1.bf16.msra.mxu0 0
      %1196 = vmatprep.subr.bf16.mxu0 0
      %1197 = vmatpush1.bf16.msra.mxu0 0
      %1198 = vmatprep.subr.bf16.mxu0 0
      %1199 = vmatpush1.bf16.msra.mxu0 0
      %1200 = vmatprep.subr.bf16.mxu0 0
      %1201 = vmatpush1.bf16.msra.mxu0 %v1184
      %1202 = vmatprep.subr.bf16.mxu0 0
      %1203 = vmatpush1.bf16.msra.mxu0 %v1183
      %1204 = vmatprep.subr.bf16.mxu0 0
      %1205 = vmatpush1.bf16.msra.mxu0 %v1182
      %1206 = vmatprep.subr.bf16.mxu0 0
      %1207 = vmatpush1.bf16.msra.mxu0 %v1181
      %1208 = vmatprep.subr.bf16.mxu0 0
      %1209 = vmatpush2.bf16.msra.mxu0 0
      %1210 = vmatprep.subr.bf16.mxu0 0
      %1211 = vmatpush2.bf16.msra.mxu0 0
      %1212 = vmatprep.subr.bf16.mxu0 0
      %1213 = vmatpush2.bf16.msra.mxu0 0
      %1214 = vmatprep.subr.bf16.mxu0 0
      %1215 = vmatpush2.bf16.msra.mxu0 0
      %1216 = vmatprep.subr.bf16.mxu0 0
      %1217 = vmatpush2.bf16.msra.mxu0 0
      %1218 = vmatprep.subr.bf16.mxu0 0
      %1219 = vmatpush2.bf16.msra.mxu0 0
      %1220 = vmatprep.subr.bf16.mxu0 0
      %1221 = vmatpush2.bf16.msra.mxu0 0
      %1222 = vmatprep.subr.bf16.mxu0 0
      %1223 = vmatpush2.bf16.msra.mxu0 0
      %1224 = vmatprep.mubr.bf16.mxu0 0
      %1225 = vmatmul.mubr.bf16.gmra.mxu0 %v1190
      %v1226 = vpop.f32.mrf.mxu0
      %v1227 = vadd.f32 %v1163, %v1226
      %v1228 = vpop.f32.mrf.mxu0
      %v1229 = vpop.f32.mrf.mxu0
      %v1230 = vpop.f32.mrf.mxu0
      %1231 = vdwg.mxu0
      %v1232 = vmax.f32 %v1227, 0.0
      %v1233 = vld [vmem:[%s16] sm:$0xf]
      %v1234 = vld [vmem:[%s16 + $0x4] sm:$0xf]
      %v1235 = vld [vmem:[%s16 + $0x8] sm:$0xf]
      %v1236 = vld [vmem:[%s16 + $0xc] sm:$0xf]
      %v1237 = vpack.c.bf16 %v1232, %v1232
      %v1242 = vunpack.c.l.b16 %v1233
      %v1243 = vunpack.c.l.b16 %v1234
      %v1244 = vunpack.c.l.b16 %v1235
      %v1245 = vunpack.c.l.b16 %v1236
      %v1246 = vpack.c.b16 %v1243, %v1242
      %v1247 = vpack.c.b16 %v1245, %v1244
      %v1251 = vsel %vm439, %v1237, 0
      %1253 = vmatprep.subr.bf16.mxu0 0
      %1254 = vmatpush1.bf16.msra.mxu0 0
      %1255 = vmatprep.subr.bf16.mxu0 0
      %1256 = vmatpush1.bf16.msra.mxu0 0
      %1257 = vmatprep.subr.bf16.mxu0 0
      %1258 = vmatpush1.bf16.msra.mxu0 0
      %1259 = vmatprep.subr.bf16.mxu0 0
      %1260 = vmatpush1.bf16.msra.mxu0 0
      %1261 = vmatprep.subr.bf16.mxu0 0
      %1262 = vmatpush1.bf16.msra.mxu0 0
      %1263 = vmatprep.subr.bf16.mxu0 0
      %1264 = vmatpush1.bf16.msra.mxu0 0
      %1265 = vmatprep.subr.bf16.mxu0 0
      %1266 = vmatpush1.bf16.msra.mxu0 %v1247
      %1267 = vmatprep.subr.bf16.mxu0 0
      %1268 = vmatpush1.bf16.msra.mxu0 %v1246
      %1269 = vmatprep.subr.bf16.mxu0 0
      %1270 = vmatpush2.bf16.msra.mxu0 0
      %1271 = vmatprep.subr.bf16.mxu0 0
      %1272 = vmatpush2.bf16.msra.mxu0 0
      %1273 = vmatprep.subr.bf16.mxu0 0
      %1274 = vmatpush2.bf16.msra.mxu0 0
      %1275 = vmatprep.subr.bf16.mxu0 0
      %1276 = vmatpush2.bf16.msra.mxu0 0
      %1277 = vmatprep.subr.bf16.mxu0 0
      %1278 = vmatpush2.bf16.msra.mxu0 0
      %1279 = vmatprep.subr.bf16.mxu0 0
      %1280 = vmatpush2.bf16.msra.mxu0 0
      %1281 = vmatprep.subr.bf16.mxu0 0
      %1282 = vmatpush2.bf16.msra.mxu0 0
      %1283 = vmatprep.subr.bf16.mxu0 0
      %1284 = vmatpush2.bf16.msra.mxu0 0
      %1285 = vmatprep.mubr.bf16.mxu0 0
      %1286 = vmatmul.mubr.bf16.gmra.mxu0 %v1251
      %v1287 = vpop.f32.mrf.mxu0
      %v1288 = vadd.f32 0.0, %v1287
      %v1289 = vpop.f32.mrf.mxu0
      %v1290 = vpop.f32.mrf.mxu0
      %v1291 = vpop.f32.mrf.mxu0
      %1292 = vdwg.mxu0
      %v1293 = vadd.f32 %v984, %v1288
      %v1294 = vld [vmem:[%s17] sm:$0x1]
      %v1296 = vlaneseq
      %v1297 = vshrl.u32 %v1296, 7
      %v1298 = vsub.s32 0, %v1297
      %v1299 = vrot.slane %v1294, %v1298
      %v1301 = vadd.f32 %v1293, %v1299
      %1302 = vst.msk [vmem:[#allocation3] sm:$0xff] %vm439, %v1301
    $region89: #{tpu_custom_call.1} parent=1 // pred_fallthru
      _
    // Predicated region
    $region90: #{tpu_custom_call.1} parent=1 // pred_check
      _
    $region91: #{tpu_custom_call.1} parent=1 // pred_check_branch
      %1304 = sbr.rel (0) target = $region93
    $region92: #{tpu_custom_call.1} parent=1 // pred_region
      %s1306 = ssub.s32 128, 128
      %1307 = vsyncadd [#allocation4], %s1306
      %s1309 = sshll.u32 [#allocation3], 4
      %s1310 = int_to_ptr.vmem [resolvable:$true] %s1309
      %1312 = dma.vmem_to_hbm [thread:$0]  %s1310, 128, %s20, [#allocation4]
    $region93: #{tpu_custom_call.1} parent=1 // pred_fallthru
      _
    // Predicated region
    $region94: #{tpu_custom_call.1} parent=1 // pred_check
      _
    $region95: #{tpu_custom_call.1} parent=1 // pred_check_branch
      %1314 = sbr.rel (0) target = $region97
    $region96: #{tpu_custom_call.1} parent=1 // pred_region
      %s1316 = ssub.s32 128, 128
      %1317 = vsyncadd [#allocation6], %s1316
      %s1319 = sshll.u32 [#allocation5], 4
      %s1320 = int_to_ptr.vmem [resolvable:$true] %s1319
      %1322 = dma.vmem_to_hbm [thread:$0]  %s1320, 128, %s21, [#allocation6]
    $region97: #{tpu_custom_call.1} parent=1 // pred_fallthru
      _
    // Predicated region
    $region98: #{tpu_custom_call.1} parent=1 // pred_check
      _
    $region99: #{tpu_custom_call.1} parent=1 // pred_check_branch
      %1324 = sbr.rel (0) target = $region101
    $region100: #{tpu_custom_call.1} parent=1 // pred_region
      %1325 = dma.done [#allocation4], 128
    $region101: #{tpu_custom_call.1} parent=1 // pred_fallthru
      _
    // Predicated region
    $region102: #{tpu_custom_call.1} parent=1 // pred_check
      _
    $region103: #{tpu_custom_call.1} parent=1 // pred_check_branch
      %1327 = sbr.rel (0) target = $region105
    $region104: #{tpu_custom_call.1} parent=1 // pred_region
      %1328 = dma.done [#allocation6], 128
    $region105: #{tpu_custom_call.1} parent=1 // pred_fallthru
      _
    %1329 = vsyncpa [#allocation4], 1
    %1330 = vsyncpa [#allocation6], 1

</llo_original>
